<compile_context>
chip_gen: v5e
topology: v5e:2x2
jax: 0.10.0
libtpu: 0.0.40
codegen_flags: <defaults>
</compile_context>

<pallas_src>
import functools
import math

import jax
import jax.numpy as jnp
from jax.experimental import pallas as pl
from jax.experimental.pallas import tpu as pltpu


def _round_up(x, m):
    return ((x + m - 1) // m) * m


def _lstm_chunk_kernel(x_ref, wih_ref, whh_ref, b_ref, h0_ref, c0_ref,
                       out_ref, hn_ref, cn_ref,
                       gx_ref, h_ref, c_ref,
                       *, steps_per_chunk, total_steps, unroll, needs_mask):
    """One grid step = one chunk of `steps_per_chunk` timesteps.

    x_ref  : (Tc*B, Fp)   f32  flattened, dense input chunk
    wih_ref: (Fp, 4*Hp)   f32  input weights, gate-major (i,f,o,g) padded layout
    whh_ref: (Hp, 4*Hp)   f32  recurrent weights, gate-major padded layout
    b_ref  : (1, 4*Hp)    f32  fused bias (b_ih + b_hh)
    h0_ref, c0_ref : (B, Hp)   initial state (padded lanes zero)
    out_ref: (Tc*B, Hp)        per-timestep hidden states for this chunk
    hn_ref, cn_ref : (B, Hp)   final state (resident output blocks)
    gx_ref : (Tc*B, 4*Hp) f32  scratch: chunk input projection
    h_ref, c_ref : (B, Hp) f32 scratch: recurrent carry across chunks
    """
    Hp = whh_ref.shape[0]
    B = h0_ref.shape[0]
    Tc = steps_per_chunk
    chunk = pl.program_id(0)

    @pl.when(chunk == 0)
    def _():
        h_ref[...] = h0_ref[...]
        c_ref[...] = c0_ref[...]

    # Non-serial part: one batched MXU matmul per chunk (input projection + bias).
    # Computed in-kernel so gx never touches HBM.
    gx_ref[...] = (jnp.dot(x_ref[...], wih_ref[...],
                           preferred_element_type=jnp.float32) + b_ref[...])

    # Loop-invariant recurrent weights: read once per chunk, no per-step casts.
    whh = whh_ref[...]

    def step(t, carry):
        h_prev, c_prev = carry
        row = t * B
        if B % 8 == 0:                      # sublane-aligned starts -> dense ld/st
            row = pl.multiple_of(row, 8)
        # Only the serial h @ W_hh matmul sits on the latency-critical path.
        gates = gx_ref[pl.ds(row, B), :] + jnp.dot(
            h_prev, whh, preferred_element_type=jnp.float32)
        # Gate layout (i, f, o, g): one fused sigmoid over 3*Hp lanes + one tanh.
        # Padded lanes: gates == 0 -> i=f=o=0.5, g=0 -> c_pad, h_pad stay 0.
        sig = jax.nn.sigmoid(gates[:, :3 * Hp])
        g = jnp.tanh(gates[:, 3 * Hp:])
        i_g = sig[:, :Hp]
        f_g = sig[:, Hp:2 * Hp]
        o_g = sig[:, 2 * Hp:3 * Hp]
        c_new = f_g * c_prev + i_g * g
        h_new = o_g * jnp.tanh(c_new)
        if needs_mask:                      # static: only when T was padded up to a chunk
            valid = (chunk * Tc + t) < total_steps
            h_new = jnp.where(valid, h_new, h_prev)
            c_new = jnp.where(valid, c_new, c_prev)
        out_ref[pl.ds(row, B), :] = h_new.astype(out_ref.dtype)
        return h_new, c_new

    h_fin, c_fin = jax.lax.fori_loop(0, Tc, step, (h_ref[...], c_ref[...]),
                                     unroll=unroll)
    h_ref[...] = h_fin
    c_ref[...] = c_fin
    hn_ref[...] = h_fin.astype(hn_ref.dtype)
    cn_ref[...] = c_fin.astype(cn_ref.dtype)


@jax.jit
def base_rnn_forward(x, w_ih, w_hh, b_ih, b_hh, h0, c0):
    """x: (T, B, F); w_ih: (4H, F); w_hh: (4H, H); b_*: (4H,);
    h0, c0: (1, B, H) like PyTorch (n_layers=1). Returns (output, (h_n, c_n))."""
    T, B, F = x.shape
    H = h0.shape[-1]
    f32 = jnp.float32

    Hp = _round_up(H, 128)                  # pad hidden dim to full 128-lane tiles
    Fp = _round_up(F, 8)                    # keep the contraction dim sublane-aligned
    pad_h = Hp - H

    # ---- T-chunking: stream x in / out back per chunk, carry h/c in scratch ----
    # Target ~2 MiB of gx scratch per chunk; keep Tc*B a multiple of 8 sublanes
    # whenever more than one chunk is needed.
    target_rows = max(8, (2 * 1024 * 1024) // (4 * 4 * Hp))
    Tc = max(1, min(T, target_rows // max(B, 1)))
    sub = 8 // math.gcd(B, 8)
    if Tc < T:
        Tc = _round_up(Tc, sub)
    nc = -(-T // Tc)                        # cdiv
    T_pad = nc * Tc

    # ---- gate-major (i, f, o, g), lane-padded weight layouts (once, outside kernel) ----
    order = jnp.array([0, 1, 3, 2])         # PyTorch rows (i, f, g, o) -> (i, f, o, g)
    wih_p = jnp.transpose(
        jnp.pad(w_ih.astype(f32).reshape(4, H, F)[order],
                ((0, 0), (0, pad_h), (0, 0))),
        (2, 0, 1)).reshape(F, 4 * Hp)
    wih_p = jnp.pad(wih_p, ((0, Fp - F), (0, 0)))
    whh_p = jnp.transpose(
        jnp.pad(w_hh.astype(f32).reshape(4, H, H)[order],
                ((0, 0), (0, pad_h), (0, pad_h))),
        (2, 0, 1)).reshape(Hp, 4 * Hp)
    b_p = jnp.pad((b_ih + b_hh).astype(f32).reshape(4, H)[order],
                  ((0, 0), (0, pad_h))).reshape(1, 4 * Hp)

    h0_p = jnp.pad(h0.reshape(B, H).astype(f32), ((0, 0), (0, pad_h)))
    c0_p = jnp.pad(c0.reshape(B, H).astype(f32), ((0, 0), (0, pad_h)))

    # Flattened, dense (T_pad*B, Fp) input — no per-timestep sublane padding.
    x_p = jnp.pad(x.reshape(T * B, F).astype(f32),
                  ((0, (T_pad - T) * B), (0, Fp - F)))

    unroll = min(Tc, 8)
    kernel = functools.partial(_lstm_chunk_kernel,
                               steps_per_chunk=Tc, total_steps=T,
                               unroll=unroll, needs_mask=(T_pad != T))

    # VMEM budget sized from the actual tile footprint (x/out double-buffered,
    # resident weights + states, gx/h/c scratch), with 2x headroom, clamped to
    # stay below v7x physical VMEM.
    est = 4 * (2 * Tc * B * Fp + 2 * Tc * B * Hp + Tc * B * 4 * Hp
               + Fp * 4 * Hp + Hp * 4 * Hp + 4 * Hp + 6 * B * Hp)
    vmem_limit = int(min(64 * 2 ** 20, max(32 * 2 ** 20, 2 * est)))

    out_p, hn_p, cn_p = pl.pallas_call(
        kernel,
        out_shape=(jax.ShapeDtypeStruct((T_pad * B, Hp), x.dtype),
                   jax.ShapeDtypeStruct((B, Hp), x.dtype),
                   jax.ShapeDtypeStruct((B, Hp), x.dtype)),
        grid_spec=pltpu.PrefetchScalarGridSpec(
            num_scalar_prefetch=0,
            grid=(nc,),
            in_specs=[
                pl.BlockSpec((Tc * B, Fp), lambda i: (i, 0)),     # x chunk (streamed)
                pl.BlockSpec((Fp, 4 * Hp), lambda i: (0, 0)),     # W_ih (resident)
                pl.BlockSpec((Hp, 4 * Hp), lambda i: (0, 0)),     # W_hh (resident)
                pl.BlockSpec((1, 4 * Hp), lambda i: (0, 0)),      # bias (resident)
                pl.BlockSpec((B, Hp), lambda i: (0, 0)),          # h0
                pl.BlockSpec((B, Hp), lambda i: (0, 0)),          # c0
            ],
            out_specs=(
                pl.BlockSpec((Tc * B, Hp), lambda i: (i, 0)),     # out chunk (streamed)
                pl.BlockSpec((B, Hp), lambda i: (0, 0)),          # h_n (resident)
                pl.BlockSpec((B, Hp), lambda i: (0, 0)),          # c_n (resident)
            ),
            scratch_shapes=[
                pltpu.VMEM((Tc * B, 4 * Hp), f32),                # gx chunk
                pltpu.VMEM((B, Hp), f32),                         # h carry
                pltpu.VMEM((B, Hp), f32),                         # c carry
            ]),
        compiler_params=pltpu.CompilerParams(
            dimension_semantics=("arbitrary",),
            vmem_limit_bytes=vmem_limit),
    )(x_p, wih_p, whh_p, b_p, h0_p, c0_p)

    # Strip T/lane padding (cheap XLA slices) and restore PyTorch's (1, B, H) layer dim.
    out = out_p[:T * B, :H].reshape(T, B, H)
    h_n = hn_p[:, :H].reshape(1, B, H)
    c_n = cn_p[:, :H].reshape(1, B, H)
    return out, (h_n, c_n)


def _lstm_reference(x, w_ih, w_hh, b_ih, b_hh, h0, c0):
    """Pure-JAX reference matching PyTorch nn.LSTM (single layer)."""
    T, B, F = x.shape
    H = h0.shape[-1]
    h = h0.reshape(B, H).astype(jnp.float32)
    c = c0.reshape(B, H).astype(jnp.float32)
    outs = []
    for t in range(T):
        gates = (x[t].astype(jnp.float32) @ w_ih.T.astype(jnp.float32)
                 + h @ w_hh.T.astype(jnp.float32)
                 + (b_ih + b_hh).astype(jnp.float32))
        i = jax.nn.sigmoid(gates[:, 0 * H:1 * H])
        f = jax.nn.sigmoid(gates[:, 1 * H:2 * H])
        g = jnp.tanh(gates[:, 2 * H:3 * H])
        o = jax.nn.sigmoid(gates[:, 3 * H:4 * H])
        c = f * c + i * g
        h = o * jnp.tanh(c)
        outs.append(h)
    return jnp.stack(outs, 0), (h[None], c[None])


if __name__ == "__main__":
    # Small shapes consistent with the module: seq=8, batch=2, features=4, hidden=32.
    T, B, F, H = 8, 2, 4, 32
    key = jax.random.PRNGKey(0)
    k = jax.random.split(key, 8)

    stdv = 1.0 / jnp.sqrt(H)
    w_ih = jax.random.uniform(k[0], (4 * H, F), jnp.float32, -stdv, stdv)
    w_hh = jax.random.uniform(k[1], (4 * H, H), jnp.float32, -stdv, stdv)
    b_ih = jax.random.uniform(k[2], (4 * H,), jnp.float32, -stdv, stdv)
    b_hh = jax.random.uniform(k[3], (4 * H,), jnp.float32, -stdv, stdv)

    x_t = jax.random.normal(k[4], (T, B, F), jnp.float32)
    h0 = jax.random.normal(k[5], (1, B, H), jnp.float32)
    c0 = jax.random.normal(k[6], (1, B, H), jnp.float32)

    out, (h_n, c_n) = base_rnn_forward(x_t, w_ih, w_hh, b_ih, b_hh, h0, c0)
    jax.block_until_ready((out, h_n, c_n))

    # Verify against pure-JAX reference of PyTorch LSTM semantics.
    out_ref, (h_ref, c_ref) = _lstm_reference(x_t, w_ih, w_hh, b_ih, b_hh, h0, c0)
    assert out.shape == (T, B, H) and h_n.shape == (1, B, H) and c_n.shape == (1, B, H)
    assert jnp.allclose(out, out_ref, atol=1e-5, rtol=1e-5)
    assert jnp.allclose(h_n, h_ref, atol=1e-5, rtol=1e-5)
    assert jnp.allclose(c_n, c_ref, atol=1e-5, rtol=1e-5)

    print("KERNEL_OK")
</pallas_src>

<mosaic_0001>
module attributes {stable_mosaic.version = 11 : i64} {
  func.func @_lstm_chunk_kernel(%arg0: i32, %arg1: memref<16x8xf32, #tpu.memory_space<vmem>>, %arg2: memref<8x512xf32, #tpu.memory_space<vmem>>, %arg3: memref<128x512xf32, #tpu.memory_space<vmem>>, %arg4: memref<1x512xf32, #tpu.memory_space<vmem>>, %arg5: memref<2x128xf32, #tpu.memory_space<vmem>>, %arg6: memref<2x128xf32, #tpu.memory_space<vmem>>, %arg7: memref<16x128xf32, #tpu.memory_space<vmem>>, %arg8: memref<2x128xf32, #tpu.memory_space<vmem>>, %arg9: memref<2x128xf32, #tpu.memory_space<vmem>>, %arg10: memref<16x512xf32, #tpu.memory_space<vmem>>, %arg11: memref<2x128xf32, #tpu.memory_space<vmem>>, %arg12: memref<2x128xf32, #tpu.memory_space<vmem>>) attributes {dimension_semantics = [#tpu.dimension_semantics<arbitrary>], iteration_bounds = array<i64: 1>, scalar_prefetch = 0 : i64, scratch_operands = 3 : i64, tpu.core_type = #tpu.core_type<tc>, window_params = [{transform_indices = @transform_0, window_bounds = array<i64: 16, 8>}, {pipeline_mode = #tpu.pipeline_mode<synchronous>, transform_indices = @transform_1, window_bounds = array<i64: 8, 512>}, {pipeline_mode = #tpu.pipeline_mode<synchronous>, transform_indices = @transform_2, window_bounds = array<i64: 128, 512>}, {pipeline_mode = #tpu.pipeline_mode<synchronous>, transform_indices = @transform_3, window_bounds = array<i64: 1, 512>}, {pipeline_mode = #tpu.pipeline_mode<synchronous>, transform_indices = @transform_4, window_bounds = array<i64: 2, 128>}, {pipeline_mode = #tpu.pipeline_mode<synchronous>, transform_indices = @transform_5, window_bounds = array<i64: 2, 128>}, {transform_indices = @transform_6, window_bounds = array<i64: 16, 128>}, {pipeline_mode = #tpu.pipeline_mode<synchronous>, transform_indices = @transform_7, window_bounds = array<i64: 2, 128>}, {pipeline_mode = #tpu.pipeline_mode<synchronous>, transform_indices = @transform_8, window_bounds = array<i64: 2, 128>}]} {
    %c0_i32 = arith.constant 0 : i32
    %0 = arith.cmpi eq, %arg0, %c0_i32 : i32
    %1 = arith.extui %0 : i1 to i32
    %c0_i32_0 = arith.constant 0 : i32
    %2 = arith.cmpi ne, %1, %c0_i32_0 : i32
    scf.if %2 {
      %c0_63 = arith.constant 0 : index
      %c0_64 = arith.constant 0 : index
      %201 = vector.load %arg5[%c0_63, %c0_64] : memref<2x128xf32, #tpu.memory_space<vmem>>, vector<2x128xf32>
      %c0_65 = arith.constant 0 : index
      %c0_66 = arith.constant 0 : index
      %202 = vector.load %arg11[%c0_65, %c0_66] : memref<2x128xf32, #tpu.memory_space<vmem>>, vector<2x128xf32>
      tpu.vector_store %arg11[%c0_65, %c0_66], %201 {strides = array<i32>} : memref<2x128xf32, #tpu.memory_space<vmem>>, vector<2x128xf32>,
      %c0_67 = arith.constant 0 : index
      %c0_68 = arith.constant 0 : index
      %203 = vector.load %arg6[%c0_67, %c0_68] : memref<2x128xf32, #tpu.memory_space<vmem>>, vector<2x128xf32>
      %c0_69 = arith.constant 0 : index
      %c0_70 = arith.constant 0 : index
      %204 = vector.load %arg12[%c0_69, %c0_70] : memref<2x128xf32, #tpu.memory_space<vmem>>, vector<2x128xf32>
      tpu.vector_store %arg12[%c0_69, %c0_70], %203 {strides = array<i32>} : memref<2x128xf32, #tpu.memory_space<vmem>>, vector<2x128xf32>,
    } else {
    }
    %c0 = arith.constant 0 : index
    %c0_1 = arith.constant 0 : index
    %3 = vector.load %arg1[%c0, %c0_1] : memref<16x8xf32, #tpu.memory_space<vmem>>, vector<16x8xf32>
    %c0_2 = arith.constant 0 : index
    %c0_3 = arith.constant 0 : index
    %4 = vector.load %arg2[%c0_2, %c0_3] : memref<8x512xf32, #tpu.memory_space<vmem>>, vector<8x512xf32>
    %cst = arith.constant dense<0.000000e+00> : vector<16x512xf32>
    %5 = tpu.matmul %3, %4, %cst {dimension_numbers = #tpu.dot_dimension_numbers<[1], [0], [0], [1], [0, 0, 1, 1], [], []>} : vector<16x8xf32>, vector<8x512xf32>, vector<16x512xf32> -> vector<16x512xf32>
    %c0_4 = arith.constant 0 : index
    %c0_5 = arith.constant 0 : index
    %6 = vector.load %arg4[%c0_4, %c0_5] : memref<1x512xf32, #tpu.memory_space<vmem>>, vector<1x512xf32>
    %7 = vector.broadcast %6 : vector<1x512xf32> to vector<16x512xf32>
    %8 = arith.addf %5, %7 : vector<16x512xf32>
    %c0_6 = arith.constant 0 : index
    %c0_7 = arith.constant 0 : index
    %9 = vector.load %arg10[%c0_6, %c0_7] : memref<16x512xf32, #tpu.memory_space<vmem>>, vector<16x512xf32>
    tpu.vector_store %arg10[%c0_6, %c0_7], %8 {strides = array<i32>} : memref<16x512xf32, #tpu.memory_space<vmem>>, vector<16x512xf32>,
    %c0_8 = arith.constant 0 : index
    %c0_9 = arith.constant 0 : index
    %10 = vector.load %arg3[%c0_8, %c0_9] : memref<128x512xf32, #tpu.memory_space<vmem>>, vector<128x512xf32>
    %c0_10 = arith.constant 0 : index
    %c0_11 = arith.constant 0 : index
    %11 = vector.load %arg11[%c0_10, %c0_11] : memref<2x128xf32, #tpu.memory_space<vmem>>, vector<2x128xf32>
    %c0_12 = arith.constant 0 : index
    %c0_13 = arith.constant 0 : index
    %12 = vector.load %arg12[%c0_12, %c0_13] : memref<2x128xf32, #tpu.memory_space<vmem>>, vector<2x128xf32>
    %c0_i32_14 = arith.constant 0 : i32
    %c2_i32 = arith.constant 2 : i32
    %13 = arith.muli %c0_i32_14, %c2_i32 : i32
    %14 = arith.index_cast %13 : i32 to index
    %c0_15 = arith.constant 0 : index
    %15 = vector.load %arg10[%14, %c0_15] : memref<16x512xf32, #tpu.memory_space<vmem>>, vector<2x512xf32>
    %cst_16 = arith.constant dense<0.000000e+00> : vector<2x512xf32>
    %16 = tpu.matmul %11, %10, %cst_16 {dimension_numbers = #tpu.dot_dimension_numbers<[1], [0], [0], [1], [0, 0, 1, 1], [], []>} : vector<2x128xf32>, vector<128x512xf32>, vector<2x512xf32> -> vector<2x512xf32>
    %17 = arith.addf %15, %16 : vector<2x512xf32>
    %18 = vector.extract_strided_slice %17 {offsets = [0, 0], sizes = [2, 384], strides = [1, 1]} : vector<2x512xf32> to vector<2x384xf32>
    %19 = arith.negf %18 : vector<2x384xf32>
    %20 = math.exp %19 : vector<2x384xf32>
    %cst_17 = arith.constant 1.000000e+00 : f32
    %21 = vector.broadcast %cst_17 : f32 to vector<2x384xf32>
    %22 = arith.addf %21, %20 : vector<2x384xf32>
    %23 = arith.divf %21, %22 : vector<2x384xf32>
    %24 = vector.extract_strided_slice %17 {offsets = [0, 384], sizes = [2, 128], strides = [1, 1]} : vector<2x512xf32> to vector<2x128xf32>
    %25 = math.tanh %24 : vector<2x128xf32>
    %26 = vector.extract_strided_slice %23 {offsets = [0, 0], sizes = [2, 128], strides = [1, 1]} : vector<2x384xf32> to vector<2x128xf32>
    %27 = vector.extract_strided_slice %23 {offsets = [0, 128], sizes = [2, 128], strides = [1, 1]} : vector<2x384xf32> to vector<2x128xf32>
    %28 = vector.extract_strided_slice %23 {offsets = [0, 256], sizes = [2, 128], strides = [1, 1]} : vector<2x384xf32> to vector<2x128xf32>
    %29 = arith.mulf %27, %12 : vector<2x128xf32>
    %30 = arith.mulf %26, %25 : vector<2x128xf32>
    %31 = arith.addf %29, %30 : vector<2x128xf32>
    %32 = math.tanh %31 : vector<2x128xf32>
    %33 = arith.mulf %28, %32 : vector<2x128xf32>
    %34 = arith.index_cast %13 : i32 to index
    %c0_18 = arith.constant 0 : index
    %35 = vector.load %arg7[%34, %c0_18] : memref<16x128xf32, #tpu.memory_space<vmem>>, vector<2x128xf32>
    tpu.vector_store %arg7[%34, %c0_18], %33 {strides = array<i32>} : memref<16x128xf32, #tpu.memory_space<vmem>>, vector<2x128xf32>,
    %c1_i32 = arith.constant 1 : i32
    %c2_i32_19 = arith.constant 2 : i32
    %36 = arith.muli %c1_i32, %c2_i32_19 : i32
    %37 = arith.index_cast %36 : i32 to index
    %c0_20 = arith.constant 0 : index
    %38 = vector.load %arg10[%37, %c0_20] : memref<16x512xf32, #tpu.memory_space<vmem>>, vector<2x512xf32>
    %cst_21 = arith.constant dense<0.000000e+00> : vector<2x512xf32>
    %39 = tpu.matmul %33, %10, %cst_21 {dimension_numbers = #tpu.dot_dimension_numbers<[1], [0], [0], [1], [0, 0, 1, 1], [], []>} : vector<2x128xf32>, vector<128x512xf32>, vector<2x512xf32> -> vector<2x512xf32>
    %40 = arith.addf %38, %39 : vector<2x512xf32>
    %41 = vector.extract_strided_slice %40 {offsets = [0, 0], sizes = [2, 384], strides = [1, 1]} : vector<2x512xf32> to vector<2x384xf32>
    %42 = arith.negf %41 : vector<2x384xf32>
    %43 = math.exp %42 : vector<2x384xf32>
    %cst_22 = arith.constant 1.000000e+00 : f32
    %44 = vector.broadcast %cst_22 : f32 to vector<2x384xf32>
    %45 = arith.addf %44, %43 : vector<2x384xf32>
    %46 = arith.divf %44, %45 : vector<2x384xf32>
    %47 = vector.extract_strided_slice %40 {offsets = [0, 384], sizes = [2, 128], strides = [1, 1]} : vector<2x512xf32> to vector<2x128xf32>
    %48 = math.tanh %47 : vector<2x128xf32>
    %49 = vector.extract_strided_slice %46 {offsets = [0, 0], sizes = [2, 128], strides = [1, 1]} : vector<2x384xf32> to vector<2x128xf32>
    %50 = vector.extract_strided_slice %46 {offsets = [0, 128], sizes = [2, 128], strides = [1, 1]} : vector<2x384xf32> to vector<2x128xf32>
    %51 = vector.extract_strided_slice %46 {offsets = [0, 256], sizes = [2, 128], strides = [1, 1]} : vector<2x384xf32> to vector<2x128xf32>
    %52 = arith.mulf %50, %31 : vector<2x128xf32>
    %53 = arith.mulf %49, %48 : vector<2x128xf32>
    %54 = arith.addf %52, %53 : vector<2x128xf32>
    %55 = math.tanh %54 : vector<2x128xf32>
    %56 = arith.mulf %51, %55 : vector<2x128xf32>
    %57 = arith.index_cast %36 : i32 to index
    %c0_23 = arith.constant 0 : index
    %58 = vector.load %arg7[%57, %c0_23] : memref<16x128xf32, #tpu.memory_space<vmem>>, vector<2x128xf32>
    tpu.vector_store %arg7[%57, %c0_23], %56 {strides = array<i32>} : memref<16x128xf32, #tpu.memory_space<vmem>>, vector<2x128xf32>,
    %c2_i32_24 = arith.constant 2 : i32
    %c2_i32_25 = arith.constant 2 : i32
    %59 = arith.muli %c2_i32_24, %c2_i32_25 : i32
    %60 = arith.index_cast %59 : i32 to index
    %c0_26 = arith.constant 0 : index
    %61 = vector.load %arg10[%60, %c0_26] : memref<16x512xf32, #tpu.memory_space<vmem>>, vector<2x512xf32>
    %cst_27 = arith.constant dense<0.000000e+00> : vector<2x512xf32>
    %62 = tpu.matmul %56, %10, %cst_27 {dimension_numbers = #tpu.dot_dimension_numbers<[1], [0], [0], [1], [0, 0, 1, 1], [], []>} : vector<2x128xf32>, vector<128x512xf32>, vector<2x512xf32> -> vector<2x512xf32>
    %63 = arith.addf %61, %62 : vector<2x512xf32>
    %64 = vector.extract_strided_slice %63 {offsets = [0, 0], sizes = [2, 384], strides = [1, 1]} : vector<2x512xf32> to vector<2x384xf32>
    %65 = arith.negf %64 : vector<2x384xf32>
    %66 = math.exp %65 : vector<2x384xf32>
    %cst_28 = arith.constant 1.000000e+00 : f32
    %67 = vector.broadcast %cst_28 : f32 to vector<2x384xf32>
    %68 = arith.addf %67, %66 : vector<2x384xf32>
    %69 = arith.divf %67, %68 : vector<2x384xf32>
    %70 = vector.extract_strided_slice %63 {offsets = [0, 384], sizes = [2, 128], strides = [1, 1]} : vector<2x512xf32> to vector<2x128xf32>
    %71 = math.tanh %70 : vector<2x128xf32>
    %72 = vector.extract_strided_slice %69 {offsets = [0, 0], sizes = [2, 128], strides = [1, 1]} : vector<2x384xf32> to vector<2x128xf32>
    %73 = vector.extract_strided_slice %69 {offsets = [0, 128], sizes = [2, 128], strides = [1, 1]} : vector<2x384xf32> to vector<2x128xf32>
    %74 = vector.extract_strided_slice %69 {offsets = [0, 256], sizes = [2, 128], strides = [1, 1]} : vector<2x384xf32> to vector<2x128xf32>
    %75 = arith.mulf %73, %54 : vector<2x128xf32>
    %76 = arith.mulf %72, %71 : vector<2x128xf32>
    %77 = arith.addf %75, %76 : vector<2x128xf32>
    %78 = math.tanh %77 : vector<2x128xf32>
    %79 = arith.mulf %74, %78 : vector<2x128xf32>
    %80 = arith.index_cast %59 : i32 to index
    %c0_29 = arith.constant 0 : index
    %81 = vector.load %arg7[%80, %c0_29] : memref<16x128xf32, #tpu.memory_space<vmem>>, vector<2x128xf32>
    tpu.vector_store %arg7[%80, %c0_29], %79 {strides = array<i32>} : memref<16x128xf32, #tpu.memory_space<vmem>>, vector<2x128xf32>,
    %c3_i32 = arith.constant 3 : i32
    %c2_i32_30 = arith.constant 2 : i32
    %82 = arith.muli %c3_i32, %c2_i32_30 : i32
    %83 = arith.index_cast %82 : i32 to index
    %c0_31 = arith.constant 0 : index
    %84 = vector.load %arg10[%83, %c0_31] : memref<16x512xf32, #tpu.memory_space<vmem>>, vector<2x512xf32>
    %cst_32 = arith.constant dense<0.000000e+00> : vector<2x512xf32>
    %85 = tpu.matmul %79, %10, %cst_32 {dimension_numbers = #tpu.dot_dimension_numbers<[1], [0], [0], [1], [0, 0, 1, 1], [], []>} : vector<2x128xf32>, vector<128x512xf32>, vector<2x512xf32> -> vector<2x512xf32>
    %86 = arith.addf %84, %85 : vector<2x512xf32>
    %87 = vector.extract_strided_slice %86 {offsets = [0, 0], sizes = [2, 384], strides = [1, 1]} : vector<2x512xf32> to vector<2x384xf32>
    %88 = arith.negf %87 : vector<2x384xf32>
    %89 = math.exp %88 : vector<2x384xf32>
    %cst_33 = arith.constant 1.000000e+00 : f32
    %90 = vector.broadcast %cst_33 : f32 to vector<2x384xf32>
    %91 = arith.addf %90, %89 : vector<2x384xf32>
    %92 = arith.divf %90, %91 : vector<2x384xf32>
    %93 = vector.extract_strided_slice %86 {offsets = [0, 384], sizes = [2, 128], strides = [1, 1]} : vector<2x512xf32> to vector<2x128xf32>
    %94 = math.tanh %93 : vector<2x128xf32>
    %95 = vector.extract_strided_slice %92 {offsets = [0, 0], sizes = [2, 128], strides = [1, 1]} : vector<2x384xf32> to vector<2x128xf32>
    %96 = vector.extract_strided_slice %92 {offsets = [0, 128], sizes = [2, 128], strides = [1, 1]} : vector<2x384xf32> to vector<2x128xf32>
    %97 = vector.extract_strided_slice %92 {offsets = [0, 256], sizes = [2, 128], strides = [1, 1]} : vector<2x384xf32> to vector<2x128xf32>
    %98 = arith.mulf %96, %77 : vector<2x128xf32>
    %99 = arith.mulf %95, %94 : vector<2x128xf32>
    %100 = arith.addf %98, %99 : vector<2x128xf32>
    %101 = math.tanh %100 : vector<2x128xf32>
    %102 = arith.mulf %97, %101 : vector<2x128xf32>
    %103 = arith.index_cast %82 : i32 to index
    %c0_34 = arith.constant 0 : index
    %104 = vector.load %arg7[%103, %c0_34] : memref<16x128xf32, #tpu.memory_space<vmem>>, vector<2x128xf32>
    tpu.vector_store %arg7[%103, %c0_34], %102 {strides = array<i32>} : memref<16x128xf32, #tpu.memory_space<vmem>>, vector<2x128xf32>,
    %c4_i32 = arith.constant 4 : i32
    %c2_i32_35 = arith.constant 2 : i32
    %105 = arith.muli %c4_i32, %c2_i32_35 : i32
    %106 = arith.index_cast %105 : i32 to index
    %c0_36 = arith.constant 0 : index
    %107 = vector.load %arg10[%106, %c0_36] : memref<16x512xf32, #tpu.memory_space<vmem>>, vector<2x512xf32>
    %cst_37 = arith.constant dense<0.000000e+00> : vector<2x512xf32>
    %108 = tpu.matmul %102, %10, %cst_37 {dimension_numbers = #tpu.dot_dimension_numbers<[1], [0], [0], [1], [0, 0, 1, 1], [], []>} : vector<2x128xf32>, vector<128x512xf32>, vector<2x512xf32> -> vector<2x512xf32>
    %109 = arith.addf %107, %108 : vector<2x512xf32>
    %110 = vector.extract_strided_slice %109 {offsets = [0, 0], sizes = [2, 384], strides = [1, 1]} : vector<2x512xf32> to vector<2x384xf32>
    %111 = arith.negf %110 : vector<2x384xf32>
    %112 = math.exp %111 : vector<2x384xf32>
    %cst_38 = arith.constant 1.000000e+00 : f32
    %113 = vector.broadcast %cst_38 : f32 to vector<2x384xf32>
    %114 = arith.addf %113, %112 : vector<2x384xf32>
    %115 = arith.divf %113, %114 : vector<2x384xf32>
    %116 = vector.extract_strided_slice %109 {offsets = [0, 384], sizes = [2, 128], strides = [1, 1]} : vector<2x512xf32> to vector<2x128xf32>
    %117 = math.tanh %116 : vector<2x128xf32>
    %118 = vector.extract_strided_slice %115 {offsets = [0, 0], sizes = [2, 128], strides = [1, 1]} : vector<2x384xf32> to vector<2x128xf32>
    %119 = vector.extract_strided_slice %115 {offsets = [0, 128], sizes = [2, 128], strides = [1, 1]} : vector<2x384xf32> to vector<2x128xf32>
    %120 = vector.extract_strided_slice %115 {offsets = [0, 256], sizes = [2, 128], strides = [1, 1]} : vector<2x384xf32> to vector<2x128xf32>
    %121 = arith.mulf %119, %100 : vector<2x128xf32>
    %122 = arith.mulf %118, %117 : vector<2x128xf32>
    %123 = arith.addf %121, %122 : vector<2x128xf32>
    %124 = math.tanh %123 : vector<2x128xf32>
    %125 = arith.mulf %120, %124 : vector<2x128xf32>
    %126 = arith.index_cast %105 : i32 to index
    %c0_39 = arith.constant 0 : index
    %127 = vector.load %arg7[%126, %c0_39] : memref<16x128xf32, #tpu.memory_space<vmem>>, vector<2x128xf32>
    tpu.vector_store %arg7[%126, %c0_39], %125 {strides = array<i32>} : memref<16x128xf32, #tpu.memory_space<vmem>>, vector<2x128xf32>,
    %c5_i32 = arith.constant 5 : i32
    %c2_i32_40 = arith.constant 2 : i32
    %128 = arith.muli %c5_i32, %c2_i32_40 : i32
    %129 = arith.index_cast %128 : i32 to index
    %c0_41 = arith.constant 0 : index
    %130 = vector.load %arg10[%129, %c0_41] : memref<16x512xf32, #tpu.memory_space<vmem>>, vector<2x512xf32>
    %cst_42 = arith.constant dense<0.000000e+00> : vector<2x512xf32>
    %131 = tpu.matmul %125, %10, %cst_42 {dimension_numbers = #tpu.dot_dimension_numbers<[1], [0], [0], [1], [0, 0, 1, 1], [], []>} : vector<2x128xf32>, vector<128x512xf32>, vector<2x512xf32> -> vector<2x512xf32>
    %132 = arith.addf %130, %131 : vector<2x512xf32>
    %133 = vector.extract_strided_slice %132 {offsets = [0, 0], sizes = [2, 384], strides = [1, 1]} : vector<2x512xf32> to vector<2x384xf32>
    %134 = arith.negf %133 : vector<2x384xf32>
    %135 = math.exp %134 : vector<2x384xf32>
    %cst_43 = arith.constant 1.000000e+00 : f32
    %136 = vector.broadcast %cst_43 : f32 to vector<2x384xf32>
    %137 = arith.addf %136, %135 : vector<2x384xf32>
    %138 = arith.divf %136, %137 : vector<2x384xf32>
    %139 = vector.extract_strided_slice %132 {offsets = [0, 384], sizes = [2, 128], strides = [1, 1]} : vector<2x512xf32> to vector<2x128xf32>
    %140 = math.tanh %139 : vector<2x128xf32>
    %141 = vector.extract_strided_slice %138 {offsets = [0, 0], sizes = [2, 128], strides = [1, 1]} : vector<2x384xf32> to vector<2x128xf32>
    %142 = vector.extract_strided_slice %138 {offsets = [0, 128], sizes = [2, 128], strides = [1, 1]} : vector<2x384xf32> to vector<2x128xf32>
    %143 = vector.extract_strided_slice %138 {offsets = [0, 256], sizes = [2, 128], strides = [1, 1]} : vector<2x384xf32> to vector<2x128xf32>
    %144 = arith.mulf %142, %123 : vector<2x128xf32>
    %145 = arith.mulf %141, %140 : vector<2x128xf32>
    %146 = arith.addf %144, %145 : vector<2x128xf32>
    %147 = math.tanh %146 : vector<2x128xf32>
    %148 = arith.mulf %143, %147 : vector<2x128xf32>
    %149 = arith.index_cast %128 : i32 to index
    %c0_44 = arith.constant 0 : index
    %150 = vector.load %arg7[%149, %c0_44] : memref<16x128xf32, #tpu.memory_space<vmem>>, vector<2x128xf32>
    tpu.vector_store %arg7[%149, %c0_44], %148 {strides = array<i32>} : memref<16x128xf32, #tpu.memory_space<vmem>>, vector<2x128xf32>,
    %c6_i32 = arith.constant 6 : i32
    %c2_i32_45 = arith.constant 2 : i32
    %151 = arith.muli %c6_i32, %c2_i32_45 : i32
    %152 = arith.index_cast %151 : i32 to index
    %c0_46 = arith.constant 0 : index
    %153 = vector.load %arg10[%152, %c0_46] : memref<16x512xf32, #tpu.memory_space<vmem>>, vector<2x512xf32>
    %cst_47 = arith.constant dense<0.000000e+00> : vector<2x512xf32>
    %154 = tpu.matmul %148, %10, %cst_47 {dimension_numbers = #tpu.dot_dimension_numbers<[1], [0], [0], [1], [0, 0, 1, 1], [], []>} : vector<2x128xf32>, vector<128x512xf32>, vector<2x512xf32> -> vector<2x512xf32>
    %155 = arith.addf %153, %154 : vector<2x512xf32>
    %156 = vector.extract_strided_slice %155 {offsets = [0, 0], sizes = [2, 384], strides = [1, 1]} : vector<2x512xf32> to vector<2x384xf32>
    %157 = arith.negf %156 : vector<2x384xf32>
    %158 = math.exp %157 : vector<2x384xf32>
    %cst_48 = arith.constant 1.000000e+00 : f32
    %159 = vector.broadcast %cst_48 : f32 to vector<2x384xf32>
    %160 = arith.addf %159, %158 : vector<2x384xf32>
    %161 = arith.divf %159, %160 : vector<2x384xf32>
    %162 = vector.extract_strided_slice %155 {offsets = [0, 384], sizes = [2, 128], strides = [1, 1]} : vector<2x512xf32> to vector<2x128xf32>
    %163 = math.tanh %162 : vector<2x128xf32>
    %164 = vector.extract_strided_slice %161 {offsets = [0, 0], sizes = [2, 128], strides = [1, 1]} : vector<2x384xf32> to vector<2x128xf32>
    %165 = vector.extract_strided_slice %161 {offsets = [0, 128], sizes = [2, 128], strides = [1, 1]} : vector<2x384xf32> to vector<2x128xf32>
    %166 = vector.extract_strided_slice %161 {offsets = [0, 256], sizes = [2, 128], strides = [1, 1]} : vector<2x384xf32> to vector<2x128xf32>
    %167 = arith.mulf %165, %146 : vector<2x128xf32>
    %168 = arith.mulf %164, %163 : vector<2x128xf32>
    %169 = arith.addf %167, %168 : vector<2x128xf32>
    %170 = math.tanh %169 : vector<2x128xf32>
    %171 = arith.mulf %166, %170 : vector<2x128xf32>
    %172 = arith.index_cast %151 : i32 to index
    %c0_49 = arith.constant 0 : index
    %173 = vector.load %arg7[%172, %c0_49] : memref<16x128xf32, #tpu.memory_space<vmem>>, vector<2x128xf32>
    tpu.vector_store %arg7[%172, %c0_49], %171 {strides = array<i32>} : memref<16x128xf32, #tpu.memory_space<vmem>>, vector<2x128xf32>,
    %c7_i32 = arith.constant 7 : i32
    %c2_i32_50 = arith.constant 2 : i32
    %174 = arith.muli %c7_i32, %c2_i32_50 : i32
    %175 = arith.index_cast %174 : i32 to index
    %c0_51 = arith.constant 0 : index
    %176 = vector.load %arg10[%175, %c0_51] : memref<16x512xf32, #tpu.memory_space<vmem>>, vector<2x512xf32>
    %cst_52 = arith.constant dense<0.000000e+00> : vector<2x512xf32>
    %177 = tpu.matmul %171, %10, %cst_52 {dimension_numbers = #tpu.dot_dimension_numbers<[1], [0], [0], [1], [0, 0, 1, 1], [], []>} : vector<2x128xf32>, vector<128x512xf32>, vector<2x512xf32> -> vector<2x512xf32>
    %178 = arith.addf %176, %177 : vector<2x512xf32>
    %179 = vector.extract_strided_slice %178 {offsets = [0, 0], sizes = [2, 384], strides = [1, 1]} : vector<2x512xf32> to vector<2x384xf32>
    %180 = arith.negf %179 : vector<2x384xf32>
    %181 = math.exp %180 : vector<2x384xf32>
    %cst_53 = arith.constant 1.000000e+00 : f32
    %182 = vector.broadcast %cst_53 : f32 to vector<2x384xf32>
    %183 = arith.addf %182, %181 : vector<2x384xf32>
    %184 = arith.divf %182, %183 : vector<2x384xf32>
    %185 = vector.extract_strided_slice %178 {offsets = [0, 384], sizes = [2, 128], strides = [1, 1]} : vector<2x512xf32> to vector<2x128xf32>
    %186 = math.tanh %185 : vector<2x128xf32>
    %187 = vector.extract_strided_slice %184 {offsets = [0, 0], sizes = [2, 128], strides = [1, 1]} : vector<2x384xf32> to vector<2x128xf32>
    %188 = vector.extract_strided_slice %184 {offsets = [0, 128], sizes = [2, 128], strides = [1, 1]} : vector<2x384xf32> to vector<2x128xf32>
    %189 = vector.extract_strided_slice %184 {offsets = [0, 256], sizes = [2, 128], strides = [1, 1]} : vector<2x384xf32> to vector<2x128xf32>
    %190 = arith.mulf %188, %169 : vector<2x128xf32>
    %191 = arith.mulf %187, %186 : vector<2x128xf32>
    %192 = arith.addf %190, %191 : vector<2x128xf32>
    %193 = math.tanh %192 : vector<2x128xf32>
    %194 = arith.mulf %189, %193 : vector<2x128xf32>
    %195 = arith.index_cast %174 : i32 to index
    %c0_54 = arith.constant 0 : index
    %196 = vector.load %arg7[%195, %c0_54] : memref<16x128xf32, #tpu.memory_space<vmem>>, vector<2x128xf32>
    tpu.vector_store %arg7[%195, %c0_54], %194 {strides = array<i32>} : memref<16x128xf32, #tpu.memory_space<vmem>>, vector<2x128xf32>,
    %c8_i32 = arith.constant 8 : i32
    %c0_55 = arith.constant 0 : index
    %c0_56 = arith.constant 0 : index
    %197 = vector.load %arg11[%c0_55, %c0_56] : memref<2x128xf32, #tpu.memory_space<vmem>>, vector<2x128xf32>
    tpu.vector_store %arg11[%c0_55, %c0_56], %194 {strides = array<i32>} : memref<2x128xf32, #tpu.memory_space<vmem>>, vector<2x128xf32>,
    %c0_57 = arith.constant 0 : index
    %c0_58 = arith.constant 0 : index
    %198 = vector.load %arg12[%c0_57, %c0_58] : memref<2x128xf32, #tpu.memory_space<vmem>>, vector<2x128xf32>
    tpu.vector_store %arg12[%c0_57, %c0_58], %192 {strides = array<i32>} : memref<2x128xf32, #tpu.memory_space<vmem>>, vector<2x128xf32>,
    %c0_59 = arith.constant 0 : index
    %c0_60 = arith.constant 0 : index
    %199 = vector.load %arg8[%c0_59, %c0_60] : memref<2x128xf32, #tpu.memory_space<vmem>>, vector<2x128xf32>
    tpu.vector_store %arg8[%c0_59, %c0_60], %194 {strides = array<i32>} : memref<2x128xf32, #tpu.memory_space<vmem>>, vector<2x128xf32>,
    %c0_61 = arith.constant 0 : index
    %c0_62 = arith.constant 0 : index
    %200 = vector.load %arg9[%c0_61, %c0_62] : memref<2x128xf32, #tpu.memory_space<vmem>>, vector<2x128xf32>
    tpu.vector_store %arg9[%c0_61, %c0_62], %192 {strides = array<i32>} : memref<2x128xf32, #tpu.memory_space<vmem>>, vector<2x128xf32>,
    return
  }
  func.func @transform_0(%arg0: i32) -> (i32, i32) {
    %c0_i32 = arith.constant 0 : i32
    %c0_i32_0 = arith.constant 0 : i32
    return %arg0, %c0_i32 : i32, i32
  }
  func.func @transform_1(%arg0: i32) -> (i32, i32) {
    %c0_i32 = arith.constant 0 : i32
    %c0_i32_0 = arith.constant 0 : i32
    %c0_i32_1 = arith.constant 0 : i32
    return %c0_i32, %c0_i32_0 : i32, i32
  }
  func.func @transform_2(%arg0: i32) -> (i32, i32) {
    %c0_i32 = arith.constant 0 : i32
    %c0_i32_0 = arith.constant 0 : i32
    %c0_i32_1 = arith.constant 0 : i32
    return %c0_i32, %c0_i32_0 : i32, i32
  }
  func.func @transform_3(%arg0: i32) -> (i32, i32) {
    %c0_i32 = arith.constant 0 : i32
    %c0_i32_0 = arith.constant 0 : i32
    %c0_i32_1 = arith.constant 0 : i32
    return %c0_i32, %c0_i32_0 : i32, i32
  }
  func.func @transform_4(%arg0: i32) -> (i32, i32) {
    %c0_i32 = arith.constant 0 : i32
    %c0_i32_0 = arith.constant 0 : i32
    %c0_i32_1 = arith.constant 0 : i32
    return %c0_i32, %c0_i32_0 : i32, i32
  }
  func.func @transform_5(%arg0: i32) -> (i32, i32) {
    %c0_i32 = arith.constant 0 : i32
    %c0_i32_0 = arith.constant 0 : i32
    %c0_i32_1 = arith.constant 0 : i32
    return %c0_i32, %c0_i32_0 : i32, i32
  }
  func.func @transform_6(%arg0: i32) -> (i32, i32) {
    %c0_i32 = arith.constant 0 : i32
    %c0_i32_0 = arith.constant 0 : i32
    return %arg0, %c0_i32 : i32, i32
  }
  func.func @transform_7(%arg0: i32) -> (i32, i32) {
    %c0_i32 = arith.constant 0 : i32
    %c0_i32_0 = arith.constant 0 : i32
    %c0_i32_1 = arith.constant 0 : i32
    return %c0_i32, %c0_i32_0 : i32, i32
  }
  func.func @transform_8(%arg0: i32) -> (i32, i32) {
    %c0_i32 = arith.constant 0 : i32
    %c0_i32_0 = arith.constant 0 : i32
    %c0_i32_1 = arith.constant 0 : i32
    return %c0_i32, %c0_i32_0 : i32, i32
  }
}

</mosaic_0001>

<llo_original>
// kernel: base_rnn_forward.1
$region0: #{base_rnn_forward.1}
  #allocation0 [shape = 'u32[]', space=smem, size = 0x4, offset = 0x4, fixed_abs, tag = 'smem constant byte address 0x4 - core index']
  #allocation1 [shape = 'u32[72,128]{1,0:T(1,128)}', space=vmem, size = 0x9000, scoped, tag = 'internal scratch']
  #allocation2 [shape = 'f32[16,512]{1,0:T(8,128)}', space=vmem, size = 0x8000, scoped, tag = 'scratch operand']
  #allocation3 [shape = 'f32[2,128]{1,0:T(2,128)}', space=vmem, size = 0x400, scoped, tag = 'scratch operand']
  #allocation4 [shape = 'f32[2,128]{1,0:T(2,128)}', space=vmem, size = 0x400, scoped, tag = 'scratch operand']
  %s0 = inlined_call_operand.vmem [shape: f32[16,8], index: 0, kind: input, shape index: {}]
  %s1 = inlined_call_operand.vmem [shape: f32[8,512], index: 1, kind: input, shape index: {}]
  %s2 = inlined_call_operand.vmem [shape: f32[128,512], index: 2, kind: input, shape index: {}]
  %s3 = inlined_call_operand.vmem [shape: f32[1,512], index: 3, kind: input, shape index: {}]
  %s4 = inlined_call_operand.vmem [shape: f32[2,128], index: 4, kind: input, shape index: {}]
  %s5 = inlined_call_operand.vmem [shape: f32[2,128], index: 5, kind: input, shape index: {}]
  %s6 = inlined_call_operand.hbm [shape: f32[16,128], index: 6, kind: output, shape index: {0}]
  %s7 = inlined_call_operand.vmem [shape: f32[2,128], index: 7, kind: output, shape index: {1}]
  %s8 = inlined_call_operand.vmem [shape: f32[2,128], index: 8, kind: output, shape index: {2}]
  %9 = xla_tuple %s6, %s7, %s8
  %s10 = sld [smem:[#allocation0]]
  $region54: #{base_rnn_forward.1} parent=0
    _
  %s12 = ssub.s32 1, %s10
  %s13 = scalar_select 0, %s12, %s10
  $region1: #{base_rnn_forward.1} parent=0
    #allocation5 [shape = 'u8[8192]{0}', space=vmem, size = 0x2000, scoped, tag = 'output window, operand 0, single buffered']
    #allocation6 [shape = 's32[1]{0}', space=sflag, size = 0x4, scoped, tag = 'scoped memory for base_rnn_forward.1']
    %14 = vsyncpa [#allocation6], 0
    // Predicated region
    $region2: #{base_rnn_forward.1} parent=1 // pred_check
      _
    $region3: #{base_rnn_forward.1} parent=1 // pred_check_branch
      %16 = sbr.rel (0) target = $region5
    $region4: #{base_rnn_forward.1} parent=1 // pred_region
      _
    $region5: #{base_rnn_forward.1} parent=1 // pred_fallthru
      _
    // Predicated region
    $region6: #{base_rnn_forward.1} parent=1 // pred_check
      _
    $region7: #{base_rnn_forward.1} parent=1 // pred_check_branch
      %18 = sbr.rel (0) target = $region9
    $region8: #{base_rnn_forward.1} parent=1 // pred_region
      _
    $region9: #{base_rnn_forward.1} parent=1 // pred_fallthru
      _
    // Predicated region
    $region10: #{base_rnn_forward.1} parent=1 // pred_check
      _
    $region11: #{base_rnn_forward.1} parent=1 // pred_check_branch
      %20 = sbr.rel (0) target = $region13
    $region12: #{base_rnn_forward.1} parent=1 // pred_region
      _
    $region13: #{base_rnn_forward.1} parent=1 // pred_fallthru
      _
    // Predicated region
    $region14: #{base_rnn_forward.1} parent=1 // pred_check
      _
    $region15: #{base_rnn_forward.1} parent=1 // pred_check_branch
      %22 = sbr.rel (0) target = $region17
    $region16: #{base_rnn_forward.1} parent=1 // pred_region
      _
    $region17: #{base_rnn_forward.1} parent=1 // pred_fallthru
      _
    // Predicated region
    $region18: #{base_rnn_forward.1} parent=1 // pred_check
      _
    $region19: #{base_rnn_forward.1} parent=1 // pred_check_branch
      %24 = sbr.rel (0) target = $region21
    $region20: #{base_rnn_forward.1} parent=1 // pred_region
      _
    $region21: #{base_rnn_forward.1} parent=1 // pred_fallthru
      _
    // Predicated region
    $region22: #{base_rnn_forward.1} parent=1 // pred_check
      _
    $region23: #{base_rnn_forward.1} parent=1 // pred_check_branch
      %26 = sbr.rel (0) target = $region25
    $region24: #{base_rnn_forward.1} parent=1 // pred_region
      _
    $region25: #{base_rnn_forward.1} parent=1 // pred_fallthru
      _
    %p27 = scmp.eq.s32.totalorder 0, 0
    // Predicated region
    $region26: #{base_rnn_forward.1} parent=1 // pred_check
      %p28 = pneg %p27
    $region27: #{base_rnn_forward.1} parent=1 // pred_check_branch
      %30 = sbr.rel (%p28) target = $region29
    $region28: #{base_rnn_forward.1} parent=1 // pred_region
      %v31 = vld [vmem:[%s4] sm:$0x3]
      %32 = vst [vmem:[#allocation3] sm:$0x3] %v31
      %v33 = vld [vmem:[%s5] sm:$0x3]
      %34 = vst [vmem:[#allocation4] sm:$0x3] %v33
    $region29: #{base_rnn_forward.1} parent=1 // pred_fallthru
      _
    %v35 = vld [vmem:[%s0] sm:$0xff]
    %v36 = vld [vmem:[%s0 + $0x8] sm:$0xff]
    %v37 = vld [vmem:[%s1] sm:$0xff]
    %v38 = vld [vmem:[%s1 + $0x8] sm:$0xff]
    %v39 = vld [vmem:[%s1 + $0x10] sm:$0xff]
    %v40 = vld [vmem:[%s1 + $0x18] sm:$0xff]
    %v41 = vld [vmem:[%s3] sm:$0xf]
    %v43 = vperm.slane %v41, 0
    %v44 = vperm.slane %v41, 1
    %v45 = vperm.slane %v41, 2
    %v46 = vperm.slane %v41, 3
    %vm51 = vcmask 64512
    %v53 = vsel %vm51, %v35, 0
    %v56 = vsel %vm51, %v36, 0
    %58 = vmatpush.msra.mxu0 0.0
    %59 = vmatpush.msra.mxu0 0.0
    %60 = vmatpush.msra.mxu0 0.0
    %61 = vmatpush.msra.mxu0 0.0
    %62 = vmatpush.msra.mxu0 0.0
    %63 = vmatpush.msra.mxu0 0.0
    %64 = vmatpush.msra.mxu0 0.0
    %65 = vmatpush.msra.mxu0 0.0
    %66 = vmatpush.msra.mxu0 0.0
    %67 = vmatpush.msra.mxu0 0.0
    %68 = vmatpush.msra.mxu0 0.0
    %69 = vmatpush.msra.mxu0 0.0
    %70 = vmatpush.msra.mxu0 0.0
    %71 = vmatpush.msra.mxu0 0.0
    %72 = vmatpush.msra.mxu0 0.0
    %73 = vmatpush.msra.mxu0 %v37
    %74 = vmatmul.f32.gmra.mxu0 %v53
    %v75 = vpop.f32.mrf.mxu0
    %v76 = vadd.f32 %v43, %v75
    %77 = vmatmul.f32.gmra.mxu0 %v56
    %v78 = vpop.f32.mrf.mxu0
    %v79 = vadd.f32 %v43, %v78
    %80 = vdwg.mxu0
    %81 = vmatpush.msra.mxu0 0.0
    %82 = vmatpush.msra.mxu0 0.0
    %83 = vmatpush.msra.mxu0 0.0
    %84 = vmatpush.msra.mxu0 0.0
    %85 = vmatpush.msra.mxu0 0.0
    %86 = vmatpush.msra.mxu0 0.0
    %87 = vmatpush.msra.mxu0 0.0
    %88 = vmatpush.msra.mxu0 0.0
    %89 = vmatpush.msra.mxu0 0.0
    %90 = vmatpush.msra.mxu0 0.0
    %91 = vmatpush.msra.mxu0 0.0
    %92 = vmatpush.msra.mxu0 0.0
    %93 = vmatpush.msra.mxu0 0.0
    %94 = vmatpush.msra.mxu0 0.0
    %95 = vmatpush.msra.mxu0 0.0
    %96 = vmatpush.msra.mxu0 %v38
    %97 = vmatmul.f32.gmra.mxu0 %v53
    %v98 = vpop.f32.mrf.mxu0
    %v99 = vadd.f32 %v44, %v98
    %100 = vmatmul.f32.gmra.mxu0 %v56
    %v101 = vpop.f32.mrf.mxu0
    %v102 = vadd.f32 %v44, %v101
    %103 = vdwg.mxu0
    %104 = vmatpush.msra.mxu0 0.0
    %105 = vmatpush.msra.mxu0 0.0
    %106 = vmatpush.msra.mxu0 0.0
    %107 = vmatpush.msra.mxu0 0.0
    %108 = vmatpush.msra.mxu0 0.0
    %109 = vmatpush.msra.mxu0 0.0
    %110 = vmatpush.msra.mxu0 0.0
    %111 = vmatpush.msra.mxu0 0.0
    %112 = vmatpush.msra.mxu0 0.0
    %113 = vmatpush.msra.mxu0 0.0
    %114 = vmatpush.msra.mxu0 0.0
    %115 = vmatpush.msra.mxu0 0.0
    %116 = vmatpush.msra.mxu0 0.0
    %117 = vmatpush.msra.mxu0 0.0
    %118 = vmatpush.msra.mxu0 0.0
    %119 = vmatpush.msra.mxu0 %v39
    %120 = vmatmul.f32.gmra.mxu0 %v53
    %v121 = vpop.f32.mrf.mxu0
    %v122 = vadd.f32 %v45, %v121
    %123 = vmatmul.f32.gmra.mxu0 %v56
    %v124 = vpop.f32.mrf.mxu0
    %v125 = vadd.f32 %v45, %v124
    %126 = vdwg.mxu0
    %127 = vmatpush.msra.mxu0 0.0
    %128 = vmatpush.msra.mxu0 0.0
    %129 = vmatpush.msra.mxu0 0.0
    %130 = vmatpush.msra.mxu0 0.0
    %131 = vmatpush.msra.mxu0 0.0
    %132 = vmatpush.msra.mxu0 0.0
    %133 = vmatpush.msra.mxu0 0.0
    %134 = vmatpush.msra.mxu0 0.0
    %135 = vmatpush.msra.mxu0 0.0
    %136 = vmatpush.msra.mxu0 0.0
    %137 = vmatpush.msra.mxu0 0.0
    %138 = vmatpush.msra.mxu0 0.0
    %139 = vmatpush.msra.mxu0 0.0
    %140 = vmatpush.msra.mxu0 0.0
    %141 = vmatpush.msra.mxu0 0.0
    %142 = vmatpush.msra.mxu0 %v40
    %143 = vmatmul.f32.gmra.mxu0 %v53
    %v144 = vpop.f32.mrf.mxu0
    %v145 = vadd.f32 %v46, %v144
    %146 = vmatmul.f32.gmra.mxu0 %v56
    %v147 = vpop.f32.mrf.mxu0
    %v148 = vadd.f32 %v46, %v147
    %149 = vdwg.mxu0
    %150 = vst [vmem:[#allocation2] sm:$0xff] %v76
    %151 = vst [vmem:[#allocation2 + $0x8] sm:$0xff] %v99
    %152 = vst [vmem:[#allocation2 + $0x10] sm:$0xff] %v122
    %153 = vst [vmem:[#allocation2 + $0x18] sm:$0xff] %v145
    %154 = vst [vmem:[#allocation2 + $0x20] sm:$0xff] %v79
    %155 = vst [vmem:[#allocation2 + $0x28] sm:$0xff] %v102
    %156 = vst [vmem:[#allocation2 + $0x30] sm:$0xff] %v125
    %157 = vst [vmem:[#allocation2 + $0x38] sm:$0xff] %v148
    %v158 = vld [vmem:[%s2] sm:$0xff]
    %v159 = vld [vmem:[%s2 + $0x8] sm:$0xff]
    %v160 = vld [vmem:[%s2 + $0x10] sm:$0xff]
    %v161 = vld [vmem:[%s2 + $0x18] sm:$0xff]
    %v162 = vld [vmem:[%s2 + $0x20] sm:$0xff]
    %v163 = vld [vmem:[%s2 + $0x28] sm:$0xff]
    %v164 = vld [vmem:[%s2 + $0x30] sm:$0xff]
    %v165 = vld [vmem:[%s2 + $0x38] sm:$0xff]
    %v166 = vld [vmem:[%s2 + $0x40] sm:$0xff]
    %v167 = vld [vmem:[%s2 + $0x48] sm:$0xff]
    %v168 = vld [vmem:[%s2 + $0x50] sm:$0xff]
    %v169 = vld [vmem:[%s2 + $0x58] sm:$0xff]
    %v170 = vld [vmem:[%s2 + $0x60] sm:$0xff]
    %v171 = vld [vmem:[%s2 + $0x68] sm:$0xff]
    %v172 = vld [vmem:[%s2 + $0x70] sm:$0xff]
    %v173 = vld [vmem:[%s2 + $0x78] sm:$0xff]
    %v174 = vld [vmem:[%s2 + $0x80] sm:$0xff]
    %v175 = vld [vmem:[%s2 + $0x88] sm:$0xff]
    %v176 = vld [vmem:[%s2 + $0x90] sm:$0xff]
    %v177 = vld [vmem:[%s2 + $0x98] sm:$0xff]
    %v178 = vld [vmem:[%s2 + $0xa0] sm:$0xff]
    %v179 = vld [vmem:[%s2 + $0xa8] sm:$0xff]
    %v180 = vld [vmem:[%s2 + $0xb0] sm:$0xff]
    %v181 = vld [vmem:[%s2 + $0xb8] sm:$0xff]
    %v182 = vld [vmem:[%s2 + $0xc0] sm:$0xff]
    %v183 = vld [vmem:[%s2 + $0xc8] sm:$0xff]
    %v184 = vld [vmem:[%s2 + $0xd0] sm:$0xff]
    %v185 = vld [vmem:[%s2 + $0xd8] sm:$0xff]
    %v186 = vld [vmem:[%s2 + $0xe0] sm:$0xff]
    %v187 = vld [vmem:[%s2 + $0xe8] sm:$0xff]
    %v188 = vld [vmem:[%s2 + $0xf0] sm:$0xff]
    %v189 = vld [vmem:[%s2 + $0xf8] sm:$0xff]
    %v190 = vld [vmem:[%s2 + $0x100] sm:$0xff]
    %v191 = vld [vmem:[%s2 + $0x108] sm:$0xff]
    %v192 = vld [vmem:[%s2 + $0x110] sm:$0xff]
    %v193 = vld [vmem:[%s2 + $0x118] sm:$0xff]
    %v194 = vld [vmem:[%s2 + $0x120] sm:$0xff]
    %v195 = vld [vmem:[%s2 + $0x128] sm:$0xff]
    %v196 = vld [vmem:[%s2 + $0x130] sm:$0xff]
    %v197 = vld [vmem:[%s2 + $0x138] sm:$0xff]
    %v198 = vld [vmem:[%s2 + $0x140] sm:$0xff]
    %v199 = vld [vmem:[%s2 + $0x148] sm:$0xff]
    %v200 = vld [vmem:[%s2 + $0x150] sm:$0xff]
    %v201 = vld [vmem:[%s2 + $0x158] sm:$0xff]
    %v202 = vld [vmem:[%s2 + $0x160] sm:$0xff]
    %v203 = vld [vmem:[%s2 + $0x168] sm:$0xff]
    %v204 = vld [vmem:[%s2 + $0x170] sm:$0xff]
    %v205 = vld [vmem:[%s2 + $0x178] sm:$0xff]
    %v206 = vld [vmem:[%s2 + $0x180] sm:$0xff]
    %v207 = vld [vmem:[%s2 + $0x188] sm:$0xff]
    %v208 = vld [vmem:[%s2 + $0x190] sm:$0xff]
    %v209 = vld [vmem:[%s2 + $0x198] sm:$0xff]
    %v210 = vld [vmem:[%s2 + $0x1a0] sm:$0xff]
    %v211 = vld [vmem:[%s2 + $0x1a8] sm:$0xff]
    %v212 = vld [vmem:[%s2 + $0x1b0] sm:$0xff]
    %v213 = vld [vmem:[%s2 + $0x1b8] sm:$0xff]
    %v214 = vld [vmem:[%s2 + $0x1c0] sm:$0xff]
    %v215 = vld [vmem:[%s2 + $0x1c8] sm:$0xff]
    %v216 = vld [vmem:[%s2 + $0x1d0] sm:$0xff]
    %v217 = vld [vmem:[%s2 + $0x1d8] sm:$0xff]
    %v218 = vld [vmem:[%s2 + $0x1e0] sm:$0xff]
    %v219 = vld [vmem:[%s2 + $0x1e8] sm:$0xff]
    %v220 = vld [vmem:[%s2 + $0x1f0] sm:$0xff]
    %v221 = vld [vmem:[%s2 + $0x1f8] sm:$0xff]
    %v222 = vld [vmem:[#allocation3] sm:$0x3]
    %v223 = vld [vmem:[#allocation4] sm:$0x3]
    %v224 = vld [vmem:[#allocation2] sm:$0x3]
    %v225 = vld [vmem:[#allocation2 + $0x8] sm:$0x3]
    %v226 = vld [vmem:[#allocation2 + $0x10] sm:$0x3]
    %v227 = vld [vmem:[#allocation2 + $0x18] sm:$0x3]
    %228 = vmatpush.msra.mxu0 %v218
    %229 = vmatpush.msra.mxu0 %v214
    %230 = vmatpush.msra.mxu0 %v210
    %231 = vmatpush.msra.mxu0 %v206
    %232 = vmatpush.msra.mxu0 %v202
    %233 = vmatpush.msra.mxu0 %v198
    %234 = vmatpush.msra.mxu0 %v194
    %235 = vmatpush.msra.mxu0 %v190
    %236 = vmatpush.msra.mxu0 %v186
    %237 = vmatpush.msra.mxu0 %v182
    %238 = vmatpush.msra.mxu0 %v178
    %239 = vmatpush.msra.mxu0 %v174
    %240 = vmatpush.msra.mxu0 %v170
    %241 = vmatpush.msra.mxu0 %v166
    %242 = vmatpush.msra.mxu0 %v162
    %243 = vmatpush.msra.mxu0 %v158
    %244 = vmatmul.f32.gmra.mxu0 %v222
    %v245 = vpop.f32.mrf.mxu0
    %v246 = vadd.f32 0.0, %v245
    %247 = vdwg.mxu0
    %248 = vmatpush.msra.mxu0 %v219
    %249 = vmatpush.msra.mxu0 %v215
    %250 = vmatpush.msra.mxu0 %v211
    %251 = vmatpush.msra.mxu0 %v207
    %252 = vmatpush.msra.mxu0 %v203
    %253 = vmatpush.msra.mxu0 %v199
    %254 = vmatpush.msra.mxu0 %v195
    %255 = vmatpush.msra.mxu0 %v191
    %256 = vmatpush.msra.mxu0 %v187
    %257 = vmatpush.msra.mxu0 %v183
    %258 = vmatpush.msra.mxu0 %v179
    %259 = vmatpush.msra.mxu0 %v175
    %260 = vmatpush.msra.mxu0 %v171
    %261 = vmatpush.msra.mxu0 %v167
    %262 = vmatpush.msra.mxu0 %v163
    %263 = vmatpush.msra.mxu0 %v159
    %264 = vmatmul.f32.gmra.mxu0 %v222
    %v265 = vpop.f32.mrf.mxu0
    %v266 = vadd.f32 0.0, %v265
    %267 = vdwg.mxu0
    %268 = vmatpush.msra.mxu0 %v220
    %269 = vmatpush.msra.mxu0 %v216
    %270 = vmatpush.msra.mxu0 %v212
    %271 = vmatpush.msra.mxu0 %v208
    %272 = vmatpush.msra.mxu0 %v204
    %273 = vmatpush.msra.mxu0 %v200
    %274 = vmatpush.msra.mxu0 %v196
    %275 = vmatpush.msra.mxu0 %v192
    %276 = vmatpush.msra.mxu0 %v188
    %277 = vmatpush.msra.mxu0 %v184
    %278 = vmatpush.msra.mxu0 %v180
    %279 = vmatpush.msra.mxu0 %v176
    %280 = vmatpush.msra.mxu0 %v172
    %281 = vmatpush.msra.mxu0 %v168
    %282 = vmatpush.msra.mxu0 %v164
    %283 = vmatpush.msra.mxu0 %v160
    %284 = vmatmul.f32.gmra.mxu0 %v222
    %v285 = vpop.f32.mrf.mxu0
    %v286 = vadd.f32 0.0, %v285
    %287 = vdwg.mxu0
    %288 = vmatpush.msra.mxu0 %v221
    %289 = vmatpush.msra.mxu0 %v217
    %290 = vmatpush.msra.mxu0 %v213
    %291 = vmatpush.msra.mxu0 %v209
    %292 = vmatpush.msra.mxu0 %v205
    %293 = vmatpush.msra.mxu0 %v201
    %294 = vmatpush.msra.mxu0 %v197
    %295 = vmatpush.msra.mxu0 %v193
    %296 = vmatpush.msra.mxu0 %v189
    %297 = vmatpush.msra.mxu0 %v185
    %298 = vmatpush.msra.mxu0 %v181
    %299 = vmatpush.msra.mxu0 %v177
    %300 = vmatpush.msra.mxu0 %v173
    %301 = vmatpush.msra.mxu0 %v169
    %302 = vmatpush.msra.mxu0 %v165
    %303 = vmatpush.msra.mxu0 %v161
    %304 = vmatmul.f32.gmra.mxu0 %v222
    %v305 = vpop.f32.mrf.mxu0
    %v306 = vadd.f32 0.0, %v305
    %307 = vdwg.mxu0
    %v308 = vadd.f32 %v224, %v246
    %v309 = vadd.f32 %v225, %v266
    %v310 = vadd.f32 %v226, %v286
    %v311 = vadd.f32 %v227, %v306
    %v312 = vxor.u32 %v308, 2147483648
    %v313 = vxor.u32 %v309, 2147483648
    %v314 = vxor.u32 %v310, 2147483648
    %v315 = vmul.f32 %v312, 1.442695
    %v316 = vpow.pop %v315
    %v317 = vmul.f32 %v313, 1.442695
    %v318 = vpow.pop %v317
    %v319 = vmul.f32 %v314, 1.442695
    %v320 = vpow.pop %v319
    %v321 = vadd.f32 %v316, 1.0
    %v322 = vadd.f32 %v318, 1.0
    %v323 = vadd.f32 %v320, 1.0
    %v324 = vrcp.pop %v321
    %v325 = vmul.f32 %v321, %v324
    %v326 = vsub.f32 1.0, %v325
    %v327 = vmul.f32 %v324, %v326
    %v328 = vadd.f32 %v324, %v327
    %vm329 = vweird.f32 %v321
    %vm330 = vweird.f32 %v324
    %vm331 = vmor %vm329, %vm330
    %v332 = vsel %vm331, %v324, %v328
    %v333 = vand.u32 2147483647, %v321
    %vm334 = vcmp.eq.f32.partialorder %v333, 8.507059e+37
    %v335 = vand.u32 %v321, 2147483648
    %v336 = vor.u32 1.1754944e-38, %v335
    %v337 = vsel %vm334, %v336, %v332
    %v338 = vmul.f32 1.0, %v337
    %v339 = vrcp.pop %v322
    %v340 = vmul.f32 %v322, %v339
    %v341 = vsub.f32 1.0, %v340
    %v342 = vmul.f32 %v339, %v341
    %v343 = vadd.f32 %v339, %v342
    %vm344 = vweird.f32 %v322
    %vm345 = vweird.f32 %v339
    %vm346 = vmor %vm344, %vm345
    %v347 = vsel %vm346, %v339, %v343
    %v348 = vand.u32 2147483647, %v322
    %vm349 = vcmp.eq.f32.partialorder %v348, 8.507059e+37
    %v350 = vand.u32 %v322, 2147483648
    %v351 = vor.u32 1.1754944e-38, %v350
    %v352 = vsel %vm349, %v351, %v347
    %v353 = vmul.f32 1.0, %v352
    %v354 = vrcp.pop %v323
    %v355 = vmul.f32 %v323, %v354
    %v356 = vsub.f32 1.0, %v355
    %v357 = vmul.f32 %v354, %v356
    %v358 = vadd.f32 %v354, %v357
    %vm359 = vweird.f32 %v323
    %vm360 = vweird.f32 %v354
    %vm361 = vmor %vm359, %vm360
    %v362 = vsel %vm361, %v354, %v358
    %v363 = vand.u32 2147483647, %v323
    %vm364 = vcmp.eq.f32.partialorder %v363, 8.507059e+37
    %v365 = vand.u32 %v323, 2147483648
    %v366 = vor.u32 1.1754944e-38, %v365
    %v367 = vsel %vm364, %v366, %v362
    %v368 = vmul.f32 1.0, %v367
    %v369 = vtanh.pop %v311
    %v370 = vmul.f32 %v353, %v223
    %v371 = vmul.f32 %v338, %v369
    %v372 = vadd.f32 %v370, %v371
    %v373 = vtanh.pop %v372
    %v374 = vmul.f32 %v368, %v373
    %375 = vst [vmem:[#allocation5] sm:$0x3] %v374
    %v376 = vld [vmem:[#allocation2] sm:$0xc]
    %v377 = vld [vmem:[#allocation2 + $0x8] sm:$0xc]
    %v378 = vld [vmem:[#allocation2 + $0x10] sm:$0xc]
    %v379 = vld [vmem:[#allocation2 + $0x18] sm:$0xc]
    %380 = vmatpush.msra.mxu0 %v218
    %381 = vmatpush.msra.mxu0 %v214
    %382 = vmatpush.msra.mxu0 %v210
    %383 = vmatpush.msra.mxu0 %v206
    %384 = vmatpush.msra.mxu0 %v202
    %385 = vmatpush.msra.mxu0 %v198
    %386 = vmatpush.msra.mxu0 %v194
    %387 = vmatpush.msra.mxu0 %v190
    %388 = vmatpush.msra.mxu0 %v186
    %389 = vmatpush.msra.mxu0 %v182
    %390 = vmatpush.msra.mxu0 %v178
    %391 = vmatpush.msra.mxu0 %v174
    %392 = vmatpush.msra.mxu0 %v170
    %393 = vmatpush.msra.mxu0 %v166
    %394 = vmatpush.msra.mxu0 %v162
    %395 = vmatpush.msra.mxu0 %v158
    %396 = vmatmul.f32.gmra.mxu0 %v374
    %v397 = vpop.f32.mrf.mxu0
    %v398 = vadd.f32 0.0, %v397
    %399 = vdwg.mxu0
    %400 = vmatpush.msra.mxu0 %v219
    %401 = vmatpush.msra.mxu0 %v215
    %402 = vmatpush.msra.mxu0 %v211
    %403 = vmatpush.msra.mxu0 %v207
    %404 = vmatpush.msra.mxu0 %v203
    %405 = vmatpush.msra.mxu0 %v199
    %406 = vmatpush.msra.mxu0 %v195
    %407 = vmatpush.msra.mxu0 %v191
    %408 = vmatpush.msra.mxu0 %v187
    %409 = vmatpush.msra.mxu0 %v183
    %410 = vmatpush.msra.mxu0 %v179
    %411 = vmatpush.msra.mxu0 %v175
    %412 = vmatpush.msra.mxu0 %v171
    %413 = vmatpush.msra.mxu0 %v167
    %414 = vmatpush.msra.mxu0 %v163
    %415 = vmatpush.msra.mxu0 %v159
    %416 = vmatmul.f32.gmra.mxu0 %v374
    %v417 = vpop.f32.mrf.mxu0
    %v418 = vadd.f32 0.0, %v417
    %419 = vdwg.mxu0
    %420 = vmatpush.msra.mxu0 %v220
    %421 = vmatpush.msra.mxu0 %v216
    %422 = vmatpush.msra.mxu0 %v212
    %423 = vmatpush.msra.mxu0 %v208
    %424 = vmatpush.msra.mxu0 %v204
    %425 = vmatpush.msra.mxu0 %v200
    %426 = vmatpush.msra.mxu0 %v196
    %427 = vmatpush.msra.mxu0 %v192
    %428 = vmatpush.msra.mxu0 %v188
    %429 = vmatpush.msra.mxu0 %v184
    %430 = vmatpush.msra.mxu0 %v180
    %431 = vmatpush.msra.mxu0 %v176
    %432 = vmatpush.msra.mxu0 %v172
    %433 = vmatpush.msra.mxu0 %v168
    %434 = vmatpush.msra.mxu0 %v164
    %435 = vmatpush.msra.mxu0 %v160
    %436 = vmatmul.f32.gmra.mxu0 %v374
    %v437 = vpop.f32.mrf.mxu0
    %v438 = vadd.f32 0.0, %v437
    %439 = vdwg.mxu0
    %440 = vmatpush.msra.mxu0 %v221
    %441 = vmatpush.msra.mxu0 %v217
    %442 = vmatpush.msra.mxu0 %v213
    %443 = vmatpush.msra.mxu0 %v209
    %444 = vmatpush.msra.mxu0 %v205
    %445 = vmatpush.msra.mxu0 %v201
    %446 = vmatpush.msra.mxu0 %v197
    %447 = vmatpush.msra.mxu0 %v193
    %448 = vmatpush.msra.mxu0 %v189
    %449 = vmatpush.msra.mxu0 %v185
    %450 = vmatpush.msra.mxu0 %v181
    %451 = vmatpush.msra.mxu0 %v177
    %452 = vmatpush.msra.mxu0 %v173
    %453 = vmatpush.msra.mxu0 %v169
    %454 = vmatpush.msra.mxu0 %v165
    %455 = vmatpush.msra.mxu0 %v161
    %456 = vmatmul.f32.gmra.mxu0 %v374
    %v457 = vpop.f32.mrf.mxu0
    %v458 = vadd.f32 0.0, %v457
    %459 = vdwg.mxu0
    %v464 = vrot.slane %v398, 6
    %v465 = vrot.slane %v418, 6
    %v466 = vrot.slane %v438, 6
    %v467 = vrot.slane %v458, 6
    %v472 = vadd.f32 %v376, %v464
    %v473 = vadd.f32 %v377, %v465
    %v474 = vadd.f32 %v378, %v466
    %v475 = vadd.f32 %v379, %v467
    %v476 = vxor.u32 %v472, 2147483648
    %v477 = vxor.u32 %v473, 2147483648
    %v478 = vxor.u32 %v474, 2147483648
    %v479 = vmul.f32 %v476, 1.442695
    %v480 = vpow.pop %v479
    %v481 = vmul.f32 %v477, 1.442695
    %v482 = vpow.pop %v481
    %v483 = vmul.f32 %v478, 1.442695
    %v484 = vpow.pop %v483
    %v485 = vadd.f32 %v480, 1.0
    %v486 = vadd.f32 %v482, 1.0
    %v487 = vadd.f32 %v484, 1.0
    %v488 = vrcp.pop %v485
    %v489 = vmul.f32 %v485, %v488
    %v490 = vsub.f32 1.0, %v489
    %v491 = vmul.f32 %v488, %v490
    %v492 = vadd.f32 %v488, %v491
    %vm493 = vweird.f32 %v485
    %vm494 = vweird.f32 %v488
    %vm495 = vmor %vm493, %vm494
    %v496 = vsel %vm495, %v488, %v492
    %v497 = vand.u32 2147483647, %v485
    %vm498 = vcmp.eq.f32.partialorder %v497, 8.507059e+37
    %v499 = vand.u32 %v485, 2147483648
    %v500 = vor.u32 1.1754944e-38, %v499
    %v501 = vsel %vm498, %v500, %v496
    %v502 = vmul.f32 1.0, %v501
    %v503 = vrcp.pop %v486
    %v504 = vmul.f32 %v486, %v503
    %v505 = vsub.f32 1.0, %v504
    %v506 = vmul.f32 %v503, %v505
    %v507 = vadd.f32 %v503, %v506
    %vm508 = vweird.f32 %v486
    %vm509 = vweird.f32 %v503
    %vm510 = vmor %vm508, %vm509
    %v511 = vsel %vm510, %v503, %v507
    %v512 = vand.u32 2147483647, %v486
    %vm513 = vcmp.eq.f32.partialorder %v512, 8.507059e+37
    %v514 = vand.u32 %v486, 2147483648
    %v515 = vor.u32 1.1754944e-38, %v514
    %v516 = vsel %vm513, %v515, %v511
    %v517 = vmul.f32 1.0, %v516
    %v518 = vrcp.pop %v487
    %v519 = vmul.f32 %v487, %v518
    %v520 = vsub.f32 1.0, %v519
    %v521 = vmul.f32 %v518, %v520
    %v522 = vadd.f32 %v518, %v521
    %vm523 = vweird.f32 %v487
    %vm524 = vweird.f32 %v518
    %vm525 = vmor %vm523, %vm524
    %v526 = vsel %vm525, %v518, %v522
    %v527 = vand.u32 2147483647, %v487
    %vm528 = vcmp.eq.f32.partialorder %v527, 8.507059e+37
    %v529 = vand.u32 %v487, 2147483648
    %v530 = vor.u32 1.1754944e-38, %v529
    %v531 = vsel %vm528, %v530, %v526
    %v532 = vmul.f32 1.0, %v531
    %v533 = vtanh.pop %v475
    %v535 = vrot.slane %v372, 6
    %v537 = vmul.f32 %v517, %v535
    %v538 = vmul.f32 %v502, %v533
    %v539 = vadd.f32 %v537, %v538
    %v540 = vtanh.pop %v539
    %v541 = vmul.f32 %v532, %v540
    %542 = vst [vmem:[#allocation5] sm:$0xc] %v541
    %v543 = vld [vmem:[#allocation2] sm:$0x30]
    %v544 = vld [vmem:[#allocation2 + $0x8] sm:$0x30]
    %v545 = vld [vmem:[#allocation2 + $0x10] sm:$0x30]
    %v546 = vld [vmem:[#allocation2 + $0x18] sm:$0x30]
    %v548 = vrot.slane %v541, 2
    %550 = vmatpush.msra.mxu0 %v218
    %551 = vmatpush.msra.mxu0 %v214
    %552 = vmatpush.msra.mxu0 %v210
    %553 = vmatpush.msra.mxu0 %v206
    %554 = vmatpush.msra.mxu0 %v202
    %555 = vmatpush.msra.mxu0 %v198
    %556 = vmatpush.msra.mxu0 %v194
    %557 = vmatpush.msra.mxu0 %v190
    %558 = vmatpush.msra.mxu0 %v186
    %559 = vmatpush.msra.mxu0 %v182
    %560 = vmatpush.msra.mxu0 %v178
    %561 = vmatpush.msra.mxu0 %v174
    %562 = vmatpush.msra.mxu0 %v170
    %563 = vmatpush.msra.mxu0 %v166
    %564 = vmatpush.msra.mxu0 %v162
    %565 = vmatpush.msra.mxu0 %v158
    %566 = vmatmul.f32.gmra.mxu0 %v548
    %v567 = vpop.f32.mrf.mxu0
    %v568 = vadd.f32 0.0, %v567
    %569 = vdwg.mxu0
    %570 = vmatpush.msra.mxu0 %v219
    %571 = vmatpush.msra.mxu0 %v215
    %572 = vmatpush.msra.mxu0 %v211
    %573 = vmatpush.msra.mxu0 %v207
    %574 = vmatpush.msra.mxu0 %v203
    %575 = vmatpush.msra.mxu0 %v199
    %576 = vmatpush.msra.mxu0 %v195
    %577 = vmatpush.msra.mxu0 %v191
    %578 = vmatpush.msra.mxu0 %v187
    %579 = vmatpush.msra.mxu0 %v183
    %580 = vmatpush.msra.mxu0 %v179
    %581 = vmatpush.msra.mxu0 %v175
    %582 = vmatpush.msra.mxu0 %v171
    %583 = vmatpush.msra.mxu0 %v167
    %584 = vmatpush.msra.mxu0 %v163
    %585 = vmatpush.msra.mxu0 %v159
    %586 = vmatmul.f32.gmra.mxu0 %v548
    %v587 = vpop.f32.mrf.mxu0
    %v588 = vadd.f32 0.0, %v587
    %589 = vdwg.mxu0
    %590 = vmatpush.msra.mxu0 %v220
    %591 = vmatpush.msra.mxu0 %v216
    %592 = vmatpush.msra.mxu0 %v212
    %593 = vmatpush.msra.mxu0 %v208
    %594 = vmatpush.msra.mxu0 %v204
    %595 = vmatpush.msra.mxu0 %v200
    %596 = vmatpush.msra.mxu0 %v196
    %597 = vmatpush.msra.mxu0 %v192
    %598 = vmatpush.msra.mxu0 %v188
    %599 = vmatpush.msra.mxu0 %v184
    %600 = vmatpush.msra.mxu0 %v180
    %601 = vmatpush.msra.mxu0 %v176
    %602 = vmatpush.msra.mxu0 %v172
    %603 = vmatpush.msra.mxu0 %v168
    %604 = vmatpush.msra.mxu0 %v164
    %605 = vmatpush.msra.mxu0 %v160
    %606 = vmatmul.f32.gmra.mxu0 %v548
    %v607 = vpop.f32.mrf.mxu0
    %v608 = vadd.f32 0.0, %v607
    %609 = vdwg.mxu0
    %610 = vmatpush.msra.mxu0 %v221
    %611 = vmatpush.msra.mxu0 %v217
    %612 = vmatpush.msra.mxu0 %v213
    %613 = vmatpush.msra.mxu0 %v209
    %614 = vmatpush.msra.mxu0 %v205
    %615 = vmatpush.msra.mxu0 %v201
    %616 = vmatpush.msra.mxu0 %v197
    %617 = vmatpush.msra.mxu0 %v193
    %618 = vmatpush.msra.mxu0 %v189
    %619 = vmatpush.msra.mxu0 %v185
    %620 = vmatpush.msra.mxu0 %v181
    %621 = vmatpush.msra.mxu0 %v177
    %622 = vmatpush.msra.mxu0 %v173
    %623 = vmatpush.msra.mxu0 %v169
    %624 = vmatpush.msra.mxu0 %v165
    %625 = vmatpush.msra.mxu0 %v161
    %626 = vmatmul.f32.gmra.mxu0 %v548
    %v627 = vpop.f32.mrf.mxu0
    %v628 = vadd.f32 0.0, %v627
    %629 = vdwg.mxu0
    %v634 = vrot.slane %v568, 4
    %v635 = vrot.slane %v588, 4
    %v636 = vrot.slane %v608, 4
    %v637 = vrot.slane %v628, 4
    %v642 = vadd.f32 %v543, %v634
    %v643 = vadd.f32 %v544, %v635
    %v644 = vadd.f32 %v545, %v636
    %v645 = vadd.f32 %v546, %v637
    %v646 = vxor.u32 %v642, 2147483648
    %v647 = vxor.u32 %v643, 2147483648
    %v648 = vxor.u32 %v644, 2147483648
    %v649 = vmul.f32 %v646, 1.442695
    %v650 = vpow.pop %v649
    %v651 = vmul.f32 %v647, 1.442695
    %v652 = vpow.pop %v651
    %v653 = vmul.f32 %v648, 1.442695
    %v654 = vpow.pop %v653
    %v655 = vadd.f32 %v650, 1.0
    %v656 = vadd.f32 %v652, 1.0
    %v657 = vadd.f32 %v654, 1.0
    %v658 = vrcp.pop %v655
    %v659 = vmul.f32 %v655, %v658
    %v660 = vsub.f32 1.0, %v659
    %v661 = vmul.f32 %v658, %v660
    %v662 = vadd.f32 %v658, %v661
    %vm663 = vweird.f32 %v655
    %vm664 = vweird.f32 %v658
    %vm665 = vmor %vm663, %vm664
    %v666 = vsel %vm665, %v658, %v662
    %v667 = vand.u32 2147483647, %v655
    %vm668 = vcmp.eq.f32.partialorder %v667, 8.507059e+37
    %v669 = vand.u32 %v655, 2147483648
    %v670 = vor.u32 1.1754944e-38, %v669
    %v671 = vsel %vm668, %v670, %v666
    %v672 = vmul.f32 1.0, %v671
    %v673 = vrcp.pop %v656
    %v674 = vmul.f32 %v656, %v673
    %v675 = vsub.f32 1.0, %v674
    %v676 = vmul.f32 %v673, %v675
    %v677 = vadd.f32 %v673, %v676
    %vm678 = vweird.f32 %v656
    %vm679 = vweird.f32 %v673
    %vm680 = vmor %vm678, %vm679
    %v681 = vsel %vm680, %v673, %v677
    %v682 = vand.u32 2147483647, %v656
    %vm683 = vcmp.eq.f32.partialorder %v682, 8.507059e+37
    %v684 = vand.u32 %v656, 2147483648
    %v685 = vor.u32 1.1754944e-38, %v684
    %v686 = vsel %vm683, %v685, %v681
    %v687 = vmul.f32 1.0, %v686
    %v688 = vrcp.pop %v657
    %v689 = vmul.f32 %v657, %v688
    %v690 = vsub.f32 1.0, %v689
    %v691 = vmul.f32 %v688, %v690
    %v692 = vadd.f32 %v688, %v691
    %vm693 = vweird.f32 %v657
    %vm694 = vweird.f32 %v688
    %vm695 = vmor %vm693, %vm694
    %v696 = vsel %vm695, %v688, %v692
    %v697 = vand.u32 2147483647, %v657
    %vm698 = vcmp.eq.f32.partialorder %v697, 8.507059e+37
    %v699 = vand.u32 %v657, 2147483648
    %v700 = vor.u32 1.1754944e-38, %v699
    %v701 = vsel %vm698, %v700, %v696
    %v702 = vmul.f32 1.0, %v701
    %v703 = vtanh.pop %v645
    %v705 = vrot.slane %v539, 6
    %v707 = vmul.f32 %v687, %v705
    %v708 = vmul.f32 %v672, %v703
    %v709 = vadd.f32 %v707, %v708
    %v710 = vtanh.pop %v709
    %v711 = vmul.f32 %v702, %v710
    %712 = vst [vmem:[#allocation5] sm:$0x30] %v711
    %v713 = vld [vmem:[#allocation2] sm:$0xc0]
    %v714 = vld [vmem:[#allocation2 + $0x8] sm:$0xc0]
    %v715 = vld [vmem:[#allocation2 + $0x10] sm:$0xc0]
    %v716 = vld [vmem:[#allocation2 + $0x18] sm:$0xc0]
    %v718 = vrot.slane %v711, 4
    %720 = vmatpush.msra.mxu0 %v218
    %721 = vmatpush.msra.mxu0 %v214
    %722 = vmatpush.msra.mxu0 %v210
    %723 = vmatpush.msra.mxu0 %v206
    %724 = vmatpush.msra.mxu0 %v202
    %725 = vmatpush.msra.mxu0 %v198
    %726 = vmatpush.msra.mxu0 %v194
    %727 = vmatpush.msra.mxu0 %v190
    %728 = vmatpush.msra.mxu0 %v186
    %729 = vmatpush.msra.mxu0 %v182
    %730 = vmatpush.msra.mxu0 %v178
    %731 = vmatpush.msra.mxu0 %v174
    %732 = vmatpush.msra.mxu0 %v170
    %733 = vmatpush.msra.mxu0 %v166
    %734 = vmatpush.msra.mxu0 %v162
    %735 = vmatpush.msra.mxu0 %v158
    %736 = vmatmul.f32.gmra.mxu0 %v718
    %v737 = vpop.f32.mrf.mxu0
    %v738 = vadd.f32 0.0, %v737
    %739 = vdwg.mxu0
    %740 = vmatpush.msra.mxu0 %v219
    %741 = vmatpush.msra.mxu0 %v215
    %742 = vmatpush.msra.mxu0 %v211
    %743 = vmatpush.msra.mxu0 %v207
    %744 = vmatpush.msra.mxu0 %v203
    %745 = vmatpush.msra.mxu0 %v199
    %746 = vmatpush.msra.mxu0 %v195
    %747 = vmatpush.msra.mxu0 %v191
    %748 = vmatpush.msra.mxu0 %v187
    %749 = vmatpush.msra.mxu0 %v183
    %750 = vmatpush.msra.mxu0 %v179
    %751 = vmatpush.msra.mxu0 %v175
    %752 = vmatpush.msra.mxu0 %v171
    %753 = vmatpush.msra.mxu0 %v167
    %754 = vmatpush.msra.mxu0 %v163
    %755 = vmatpush.msra.mxu0 %v159
    %756 = vmatmul.f32.gmra.mxu0 %v718
    %v757 = vpop.f32.mrf.mxu0
    %v758 = vadd.f32 0.0, %v757
    %759 = vdwg.mxu0
    %760 = vmatpush.msra.mxu0 %v220
    %761 = vmatpush.msra.mxu0 %v216
    %762 = vmatpush.msra.mxu0 %v212
    %763 = vmatpush.msra.mxu0 %v208
    %764 = vmatpush.msra.mxu0 %v204
    %765 = vmatpush.msra.mxu0 %v200
    %766 = vmatpush.msra.mxu0 %v196
    %767 = vmatpush.msra.mxu0 %v192
    %768 = vmatpush.msra.mxu0 %v188
    %769 = vmatpush.msra.mxu0 %v184
    %770 = vmatpush.msra.mxu0 %v180
    %771 = vmatpush.msra.mxu0 %v176
    %772 = vmatpush.msra.mxu0 %v172
    %773 = vmatpush.msra.mxu0 %v168
    %774 = vmatpush.msra.mxu0 %v164
    %775 = vmatpush.msra.mxu0 %v160
    %776 = vmatmul.f32.gmra.mxu0 %v718
    %v777 = vpop.f32.mrf.mxu0
    %v778 = vadd.f32 0.0, %v777
    %779 = vdwg.mxu0
    %780 = vmatpush.msra.mxu0 %v221
    %781 = vmatpush.msra.mxu0 %v217
    %782 = vmatpush.msra.mxu0 %v213
    %783 = vmatpush.msra.mxu0 %v209
    %784 = vmatpush.msra.mxu0 %v205
    %785 = vmatpush.msra.mxu0 %v201
    %786 = vmatpush.msra.mxu0 %v197
    %787 = vmatpush.msra.mxu0 %v193
    %788 = vmatpush.msra.mxu0 %v189
    %789 = vmatpush.msra.mxu0 %v185
    %790 = vmatpush.msra.mxu0 %v181
    %791 = vmatpush.msra.mxu0 %v177
    %792 = vmatpush.msra.mxu0 %v173
    %793 = vmatpush.msra.mxu0 %v169
    %794 = vmatpush.msra.mxu0 %v165
    %795 = vmatpush.msra.mxu0 %v161
    %796 = vmatmul.f32.gmra.mxu0 %v718
    %v797 = vpop.f32.mrf.mxu0
    %v798 = vadd.f32 0.0, %v797
    %799 = vdwg.mxu0
    %v804 = vrot.slane %v738, 2
    %v805 = vrot.slane %v758, 2
    %v806 = vrot.slane %v778, 2
    %v807 = vrot.slane %v798, 2
    %v812 = vadd.f32 %v713, %v804
    %v813 = vadd.f32 %v714, %v805
    %v814 = vadd.f32 %v715, %v806
    %v815 = vadd.f32 %v716, %v807
    %v816 = vxor.u32 %v812, 2147483648
    %v817 = vxor.u32 %v813, 2147483648
    %v818 = vxor.u32 %v814, 2147483648
    %v819 = vmul.f32 %v816, 1.442695
    %v820 = vpow.pop %v819
    %v821 = vmul.f32 %v817, 1.442695
    %v822 = vpow.pop %v821
    %v823 = vmul.f32 %v818, 1.442695
    %v824 = vpow.pop %v823
    %v825 = vadd.f32 %v820, 1.0
    %v826 = vadd.f32 %v822, 1.0
    %v827 = vadd.f32 %v824, 1.0
    %v828 = vrcp.pop %v825
    %v829 = vmul.f32 %v825, %v828
    %v830 = vsub.f32 1.0, %v829
    %v831 = vmul.f32 %v828, %v830
    %v832 = vadd.f32 %v828, %v831
    %vm833 = vweird.f32 %v825
    %vm834 = vweird.f32 %v828
    %vm835 = vmor %vm833, %vm834
    %v836 = vsel %vm835, %v828, %v832
    %v837 = vand.u32 2147483647, %v825
    %vm838 = vcmp.eq.f32.partialorder %v837, 8.507059e+37
    %v839 = vand.u32 %v825, 2147483648
    %v840 = vor.u32 1.1754944e-38, %v839
    %v841 = vsel %vm838, %v840, %v836
    %v842 = vmul.f32 1.0, %v841
    %v843 = vrcp.pop %v826
    %v844 = vmul.f32 %v826, %v843
    %v845 = vsub.f32 1.0, %v844
    %v846 = vmul.f32 %v843, %v845
    %v847 = vadd.f32 %v843, %v846
    %vm848 = vweird.f32 %v826
    %vm849 = vweird.f32 %v843
    %vm850 = vmor %vm848, %vm849
    %v851 = vsel %vm850, %v843, %v847
    %v852 = vand.u32 2147483647, %v826
    %vm853 = vcmp.eq.f32.partialorder %v852, 8.507059e+37
    %v854 = vand.u32 %v826, 2147483648
    %v855 = vor.u32 1.1754944e-38, %v854
    %v856 = vsel %vm853, %v855, %v851
    %v857 = vmul.f32 1.0, %v856
    %v858 = vrcp.pop %v827
    %v859 = vmul.f32 %v827, %v858
    %v860 = vsub.f32 1.0, %v859
    %v861 = vmul.f32 %v858, %v860
    %v862 = vadd.f32 %v858, %v861
    %vm863 = vweird.f32 %v827
    %vm864 = vweird.f32 %v858
    %vm865 = vmor %vm863, %vm864
    %v866 = vsel %vm865, %v858, %v862
    %v867 = vand.u32 2147483647, %v827
    %vm868 = vcmp.eq.f32.partialorder %v867, 8.507059e+37
    %v869 = vand.u32 %v827, 2147483648
    %v870 = vor.u32 1.1754944e-38, %v869
    %v871 = vsel %vm868, %v870, %v866
    %v872 = vmul.f32 1.0, %v871
    %v873 = vtanh.pop %v815
    %v875 = vrot.slane %v709, 6
    %v877 = vmul.f32 %v857, %v875
    %v878 = vmul.f32 %v842, %v873
    %v879 = vadd.f32 %v877, %v878
    %v880 = vtanh.pop %v879
    %v881 = vmul.f32 %v872, %v880
    %882 = vst [vmem:[#allocation5] sm:$0xc0] %v881
    %v883 = vld [vmem:[#allocation2 + $0x20] sm:$0x3]
    %v884 = vld [vmem:[#allocation2 + $0x28] sm:$0x3]
    %v885 = vld [vmem:[#allocation2 + $0x30] sm:$0x3]
    %v886 = vld [vmem:[#allocation2 + $0x38] sm:$0x3]
    %v888 = vrot.slane %v881, 6
    %890 = vmatpush.msra.mxu0 %v218
    %891 = vmatpush.msra.mxu0 %v214
    %892 = vmatpush.msra.mxu0 %v210
    %893 = vmatpush.msra.mxu0 %v206
    %894 = vmatpush.msra.mxu0 %v202
    %895 = vmatpush.msra.mxu0 %v198
    %896 = vmatpush.msra.mxu0 %v194
    %897 = vmatpush.msra.mxu0 %v190
    %898 = vmatpush.msra.mxu0 %v186
    %899 = vmatpush.msra.mxu0 %v182
    %900 = vmatpush.msra.mxu0 %v178
    %901 = vmatpush.msra.mxu0 %v174
    %902 = vmatpush.msra.mxu0 %v170
    %903 = vmatpush.msra.mxu0 %v166
    %904 = vmatpush.msra.mxu0 %v162
    %905 = vmatpush.msra.mxu0 %v158
    %906 = vmatmul.f32.gmra.mxu0 %v888
    %v907 = vpop.f32.mrf.mxu0
    %v908 = vadd.f32 0.0, %v907
    %909 = vdwg.mxu0
    %910 = vmatpush.msra.mxu0 %v219
    %911 = vmatpush.msra.mxu0 %v215
    %912 = vmatpush.msra.mxu0 %v211
    %913 = vmatpush.msra.mxu0 %v207
    %914 = vmatpush.msra.mxu0 %v203
    %915 = vmatpush.msra.mxu0 %v199
    %916 = vmatpush.msra.mxu0 %v195
    %917 = vmatpush.msra.mxu0 %v191
    %918 = vmatpush.msra.mxu0 %v187
    %919 = vmatpush.msra.mxu0 %v183
    %920 = vmatpush.msra.mxu0 %v179
    %921 = vmatpush.msra.mxu0 %v175
    %922 = vmatpush.msra.mxu0 %v171
    %923 = vmatpush.msra.mxu0 %v167
    %924 = vmatpush.msra.mxu0 %v163
    %925 = vmatpush.msra.mxu0 %v159
    %926 = vmatmul.f32.gmra.mxu0 %v888
    %v927 = vpop.f32.mrf.mxu0
    %v928 = vadd.f32 0.0, %v927
    %929 = vdwg.mxu0
    %930 = vmatpush.msra.mxu0 %v220
    %931 = vmatpush.msra.mxu0 %v216
    %932 = vmatpush.msra.mxu0 %v212
    %933 = vmatpush.msra.mxu0 %v208
    %934 = vmatpush.msra.mxu0 %v204
    %935 = vmatpush.msra.mxu0 %v200
    %936 = vmatpush.msra.mxu0 %v196
    %937 = vmatpush.msra.mxu0 %v192
    %938 = vmatpush.msra.mxu0 %v188
    %939 = vmatpush.msra.mxu0 %v184
    %940 = vmatpush.msra.mxu0 %v180
    %941 = vmatpush.msra.mxu0 %v176
    %942 = vmatpush.msra.mxu0 %v172
    %943 = vmatpush.msra.mxu0 %v168
    %944 = vmatpush.msra.mxu0 %v164
    %945 = vmatpush.msra.mxu0 %v160
    %946 = vmatmul.f32.gmra.mxu0 %v888
    %v947 = vpop.f32.mrf.mxu0
    %v948 = vadd.f32 0.0, %v947
    %949 = vdwg.mxu0
    %950 = vmatpush.msra.mxu0 %v221
    %951 = vmatpush.msra.mxu0 %v217
    %952 = vmatpush.msra.mxu0 %v213
    %953 = vmatpush.msra.mxu0 %v209
    %954 = vmatpush.msra.mxu0 %v205
    %955 = vmatpush.msra.mxu0 %v201
    %956 = vmatpush.msra.mxu0 %v197
    %957 = vmatpush.msra.mxu0 %v193
    %958 = vmatpush.msra.mxu0 %v189
    %959 = vmatpush.msra.mxu0 %v185
    %960 = vmatpush.msra.mxu0 %v181
    %961 = vmatpush.msra.mxu0 %v177
    %962 = vmatpush.msra.mxu0 %v173
    %963 = vmatpush.msra.mxu0 %v169
    %964 = vmatpush.msra.mxu0 %v165
    %965 = vmatpush.msra.mxu0 %v161
    %966 = vmatmul.f32.gmra.mxu0 %v888
    %v967 = vpop.f32.mrf.mxu0
    %v968 = vadd.f32 0.0, %v967
    %969 = vdwg.mxu0
    %v970 = vadd.f32 %v883, %v908
    %v971 = vadd.f32 %v884, %v928
    %v972 = vadd.f32 %v885, %v948
    %v973 = vadd.f32 %v886, %v968
    %v974 = vxor.u32 %v970, 2147483648
    %v975 = vxor.u32 %v971, 2147483648
    %v976 = vxor.u32 %v972, 2147483648
    %v977 = vmul.f32 %v974, 1.442695
    %v978 = vpow.pop %v977
    %v979 = vmul.f32 %v975, 1.442695
    %v980 = vpow.pop %v979
    %v981 = vmul.f32 %v976, 1.442695
    %v982 = vpow.pop %v981
    %v983 = vadd.f32 %v978, 1.0
    %v984 = vadd.f32 %v980, 1.0
    %v985 = vadd.f32 %v982, 1.0
    %v986 = vrcp.pop %v983
    %v987 = vmul.f32 %v983, %v986
    %v988 = vsub.f32 1.0, %v987
    %v989 = vmul.f32 %v986, %v988
    %v990 = vadd.f32 %v986, %v989
    %vm991 = vweird.f32 %v983
    %vm992 = vweird.f32 %v986
    %vm993 = vmor %vm991, %vm992
    %v994 = vsel %vm993, %v986, %v990
    %v995 = vand.u32 2147483647, %v983
    %vm996 = vcmp.eq.f32.partialorder %v995, 8.507059e+37
    %v997 = vand.u32 %v983, 2147483648
    %v998 = vor.u32 1.1754944e-38, %v997
    %v999 = vsel %vm996, %v998, %v994
    %v1000 = vmul.f32 1.0, %v999
    %v1001 = vrcp.pop %v984
    %v1002 = vmul.f32 %v984, %v1001
    %v1003 = vsub.f32 1.0, %v1002
    %v1004 = vmul.f32 %v1001, %v1003
    %v1005 = vadd.f32 %v1001, %v1004
    %vm1006 = vweird.f32 %v984
    %vm1007 = vweird.f32 %v1001
    %vm1008 = vmor %vm1006, %vm1007
    %v1009 = vsel %vm1008, %v1001, %v1005
    %v1010 = vand.u32 2147483647, %v984
    %vm1011 = vcmp.eq.f32.partialorder %v1010, 8.507059e+37
    %v1012 = vand.u32 %v984, 2147483648
    %v1013 = vor.u32 1.1754944e-38, %v1012
    %v1014 = vsel %vm1011, %v1013, %v1009
    %v1015 = vmul.f32 1.0, %v1014
    %v1016 = vrcp.pop %v985
    %v1017 = vmul.f32 %v985, %v1016
    %v1018 = vsub.f32 1.0, %v1017
    %v1019 = vmul.f32 %v1016, %v1018
    %v1020 = vadd.f32 %v1016, %v1019
    %vm1021 = vweird.f32 %v985
    %vm1022 = vweird.f32 %v1016
    %vm1023 = vmor %vm1021, %vm1022
    %v1024 = vsel %vm1023, %v1016, %v1020
    %v1025 = vand.u32 2147483647, %v985
    %vm1026 = vcmp.eq.f32.partialorder %v1025, 8.507059e+37
    %v1027 = vand.u32 %v985, 2147483648
    %v1028 = vor.u32 1.1754944e-38, %v1027
    %v1029 = vsel %vm1026, %v1028, %v1024
    %v1030 = vmul.f32 1.0, %v1029
    %v1031 = vtanh.pop %v973
    %v1033 = vrot.slane %v879, 6
    %v1035 = vmul.f32 %v1015, %v1033
    %v1036 = vmul.f32 %v1000, %v1031
    %v1037 = vadd.f32 %v1035, %v1036
    %v1038 = vtanh.pop %v1037
    %v1039 = vmul.f32 %v1030, %v1038
    %1040 = vst [vmem:[#allocation5 + $0x8] sm:$0x3] %v1039
    %v1041 = vld [vmem:[#allocation2 + $0x20] sm:$0xc]
    %v1042 = vld [vmem:[#allocation2 + $0x28] sm:$0xc]
    %v1043 = vld [vmem:[#allocation2 + $0x30] sm:$0xc]
    %v1044 = vld [vmem:[#allocation2 + $0x38] sm:$0xc]
    %1045 = vmatpush.msra.mxu0 %v218
    %1046 = vmatpush.msra.mxu0 %v214
    %1047 = vmatpush.msra.mxu0 %v210
    %1048 = vmatpush.msra.mxu0 %v206
    %1049 = vmatpush.msra.mxu0 %v202
    %1050 = vmatpush.msra.mxu0 %v198
    %1051 = vmatpush.msra.mxu0 %v194
    %1052 = vmatpush.msra.mxu0 %v190
    %1053 = vmatpush.msra.mxu0 %v186
    %1054 = vmatpush.msra.mxu0 %v182
    %1055 = vmatpush.msra.mxu0 %v178
    %1056 = vmatpush.msra.mxu0 %v174
    %1057 = vmatpush.msra.mxu0 %v170
    %1058 = vmatpush.msra.mxu0 %v166
    %1059 = vmatpush.msra.mxu0 %v162
    %1060 = vmatpush.msra.mxu0 %v158
    %1061 = vmatmul.f32.gmra.mxu0 %v1039
    %v1062 = vpop.f32.mrf.mxu0
    %v1063 = vadd.f32 0.0, %v1062
    %1064 = vdwg.mxu0
    %1065 = vmatpush.msra.mxu0 %v219
    %1066 = vmatpush.msra.mxu0 %v215
    %1067 = vmatpush.msra.mxu0 %v211
    %1068 = vmatpush.msra.mxu0 %v207
    %1069 = vmatpush.msra.mxu0 %v203
    %1070 = vmatpush.msra.mxu0 %v199
    %1071 = vmatpush.msra.mxu0 %v195
    %1072 = vmatpush.msra.mxu0 %v191
    %1073 = vmatpush.msra.mxu0 %v187
    %1074 = vmatpush.msra.mxu0 %v183
    %1075 = vmatpush.msra.mxu0 %v179
    %1076 = vmatpush.msra.mxu0 %v175
    %1077 = vmatpush.msra.mxu0 %v171
    %1078 = vmatpush.msra.mxu0 %v167
    %1079 = vmatpush.msra.mxu0 %v163
    %1080 = vmatpush.msra.mxu0 %v159
    %1081 = vmatmul.f32.gmra.mxu0 %v1039
    %v1082 = vpop.f32.mrf.mxu0
    %v1083 = vadd.f32 0.0, %v1082
    %1084 = vdwg.mxu0
    %1085 = vmatpush.msra.mxu0 %v220
    %1086 = vmatpush.msra.mxu0 %v216
    %1087 = vmatpush.msra.mxu0 %v212
    %1088 = vmatpush.msra.mxu0 %v208
    %1089 = vmatpush.msra.mxu0 %v204
    %1090 = vmatpush.msra.mxu0 %v200
    %1091 = vmatpush.msra.mxu0 %v196
    %1092 = vmatpush.msra.mxu0 %v192
    %1093 = vmatpush.msra.mxu0 %v188
    %1094 = vmatpush.msra.mxu0 %v184
    %1095 = vmatpush.msra.mxu0 %v180
    %1096 = vmatpush.msra.mxu0 %v176
    %1097 = vmatpush.msra.mxu0 %v172
    %1098 = vmatpush.msra.mxu0 %v168
    %1099 = vmatpush.msra.mxu0 %v164
    %1100 = vmatpush.msra.mxu0 %v160
    %1101 = vmatmul.f32.gmra.mxu0 %v1039
    %v1102 = vpop.f32.mrf.mxu0
    %v1103 = vadd.f32 0.0, %v1102
    %1104 = vdwg.mxu0
    %1105 = vmatpush.msra.mxu0 %v221
    %1106 = vmatpush.msra.mxu0 %v217
    %1107 = vmatpush.msra.mxu0 %v213
    %1108 = vmatpush.msra.mxu0 %v209
    %1109 = vmatpush.msra.mxu0 %v205
    %1110 = vmatpush.msra.mxu0 %v201
    %1111 = vmatpush.msra.mxu0 %v197
    %1112 = vmatpush.msra.mxu0 %v193
    %1113 = vmatpush.msra.mxu0 %v189
    %1114 = vmatpush.msra.mxu0 %v185
    %1115 = vmatpush.msra.mxu0 %v181
    %1116 = vmatpush.msra.mxu0 %v177
    %1117 = vmatpush.msra.mxu0 %v173
    %1118 = vmatpush.msra.mxu0 %v169
    %1119 = vmatpush.msra.mxu0 %v165
    %1120 = vmatpush.msra.mxu0 %v161
    %1121 = vmatmul.f32.gmra.mxu0 %v1039
    %v1122 = vpop.f32.mrf.mxu0
    %v1123 = vadd.f32 0.0, %v1122
    %1124 = vdwg.mxu0
    %v1129 = vrot.slane %v1063, 6
    %v1130 = vrot.slane %v1083, 6
    %v1131 = vrot.slane %v1103, 6
    %v1132 = vrot.slane %v1123, 6
    %v1137 = vadd.f32 %v1041, %v1129
    %v1138 = vadd.f32 %v1042, %v1130
    %v1139 = vadd.f32 %v1043, %v1131
    %v1140 = vadd.f32 %v1044, %v1132
    %v1141 = vxor.u32 %v1137, 2147483648
    %v1142 = vxor.u32 %v1138, 2147483648
    %v1143 = vxor.u32 %v1139, 2147483648
    %v1144 = vmul.f32 %v1141, 1.442695
    %v1145 = vpow.pop %v1144
    %v1146 = vmul.f32 %v1142, 1.442695
    %v1147 = vpow.pop %v1146
    %v1148 = vmul.f32 %v1143, 1.442695
    %v1149 = vpow.pop %v1148
    %v1150 = vadd.f32 %v1145, 1.0
    %v1151 = vadd.f32 %v1147, 1.0
    %v1152 = vadd.f32 %v1149, 1.0
    %v1153 = vrcp.pop %v1150
    %v1154 = vmul.f32 %v1150, %v1153
    %v1155 = vsub.f32 1.0, %v1154
    %v1156 = vmul.f32 %v1153, %v1155
    %v1157 = vadd.f32 %v1153, %v1156
    %vm1158 = vweird.f32 %v1150
    %vm1159 = vweird.f32 %v1153
    %vm1160 = vmor %vm1158, %vm1159
    %v1161 = vsel %vm1160, %v1153, %v1157
    %v1162 = vand.u32 2147483647, %v1150
    %vm1163 = vcmp.eq.f32.partialorder %v1162, 8.507059e+37
    %v1164 = vand.u32 %v1150, 2147483648
    %v1165 = vor.u32 1.1754944e-38, %v1164
    %v1166 = vsel %vm1163, %v1165, %v1161
    %v1167 = vmul.f32 1.0, %v1166
    %v1168 = vrcp.pop %v1151
    %v1169 = vmul.f32 %v1151, %v1168
    %v1170 = vsub.f32 1.0, %v1169
    %v1171 = vmul.f32 %v1168, %v1170
    %v1172 = vadd.f32 %v1168, %v1171
    %vm1173 = vweird.f32 %v1151
    %vm1174 = vweird.f32 %v1168
    %vm1175 = vmor %vm1173, %vm1174
    %v1176 = vsel %vm1175, %v1168, %v1172
    %v1177 = vand.u32 2147483647, %v1151
    %vm1178 = vcmp.eq.f32.partialorder %v1177, 8.507059e+37
    %v1179 = vand.u32 %v1151, 2147483648
    %v1180 = vor.u32 1.1754944e-38, %v1179
    %v1181 = vsel %vm1178, %v1180, %v1176
    %v1182 = vmul.f32 1.0, %v1181
    %v1183 = vrcp.pop %v1152
    %v1184 = vmul.f32 %v1152, %v1183
    %v1185 = vsub.f32 1.0, %v1184
    %v1186 = vmul.f32 %v1183, %v1185
    %v1187 = vadd.f32 %v1183, %v1186
    %vm1188 = vweird.f32 %v1152
    %vm1189 = vweird.f32 %v1183
    %vm1190 = vmor %vm1188, %vm1189
    %v1191 = vsel %vm1190, %v1183, %v1187
    %v1192 = vand.u32 2147483647, %v1152
    %vm1193 = vcmp.eq.f32.partialorder %v1192, 8.507059e+37
    %v1194 = vand.u32 %v1152, 2147483648
    %v1195 = vor.u32 1.1754944e-38, %v1194
    %v1196 = vsel %vm1193, %v1195, %v1191
    %v1197 = vmul.f32 1.0, %v1196
    %v1198 = vtanh.pop %v1140
    %v1200 = vrot.slane %v1037, 6
    %v1202 = vmul.f32 %v1182, %v1200
    %v1203 = vmul.f32 %v1167, %v1198
    %v1204 = vadd.f32 %v1202, %v1203
    %v1205 = vtanh.pop %v1204
    %v1206 = vmul.f32 %v1197, %v1205
    %1207 = vst [vmem:[#allocation5 + $0x8] sm:$0xc] %v1206
    %v1208 = vld [vmem:[#allocation2 + $0x20] sm:$0x30]
    %v1209 = vld [vmem:[#allocation2 + $0x28] sm:$0x30]
    %v1210 = vld [vmem:[#allocation2 + $0x30] sm:$0x30]
    %v1211 = vld [vmem:[#allocation2 + $0x38] sm:$0x30]
    %v1213 = vrot.slane %v1206, 2
    %1215 = vmatpush.msra.mxu0 %v218
    %1216 = vmatpush.msra.mxu0 %v214
    %1217 = vmatpush.msra.mxu0 %v210
    %1218 = vmatpush.msra.mxu0 %v206
    %1219 = vmatpush.msra.mxu0 %v202
    %1220 = vmatpush.msra.mxu0 %v198
    %1221 = vmatpush.msra.mxu0 %v194
    %1222 = vmatpush.msra.mxu0 %v190
    %1223 = vmatpush.msra.mxu0 %v186
    %1224 = vmatpush.msra.mxu0 %v182
    %1225 = vmatpush.msra.mxu0 %v178
    %1226 = vmatpush.msra.mxu0 %v174
    %1227 = vmatpush.msra.mxu0 %v170
    %1228 = vmatpush.msra.mxu0 %v166
    %1229 = vmatpush.msra.mxu0 %v162
    %1230 = vmatpush.msra.mxu0 %v158
    %1231 = vmatmul.f32.gmra.mxu0 %v1213
    %v1232 = vpop.f32.mrf.mxu0
    %v1233 = vadd.f32 0.0, %v1232
    %1234 = vdwg.mxu0
    %1235 = vmatpush.msra.mxu0 %v219
    %1236 = vmatpush.msra.mxu0 %v215
    %1237 = vmatpush.msra.mxu0 %v211
    %1238 = vmatpush.msra.mxu0 %v207
    %1239 = vmatpush.msra.mxu0 %v203
    %1240 = vmatpush.msra.mxu0 %v199
    %1241 = vmatpush.msra.mxu0 %v195
    %1242 = vmatpush.msra.mxu0 %v191
    %1243 = vmatpush.msra.mxu0 %v187
    %1244 = vmatpush.msra.mxu0 %v183
    %1245 = vmatpush.msra.mxu0 %v179
    %1246 = vmatpush.msra.mxu0 %v175
    %1247 = vmatpush.msra.mxu0 %v171
    %1248 = vmatpush.msra.mxu0 %v167
    %1249 = vmatpush.msra.mxu0 %v163
    %1250 = vmatpush.msra.mxu0 %v159
    %1251 = vmatmul.f32.gmra.mxu0 %v1213
    %v1252 = vpop.f32.mrf.mxu0
    %v1253 = vadd.f32 0.0, %v1252
    %1254 = vdwg.mxu0
    %1255 = vmatpush.msra.mxu0 %v220
    %1256 = vmatpush.msra.mxu0 %v216
    %1257 = vmatpush.msra.mxu0 %v212
    %1258 = vmatpush.msra.mxu0 %v208
    %1259 = vmatpush.msra.mxu0 %v204
    %1260 = vmatpush.msra.mxu0 %v200
    %1261 = vmatpush.msra.mxu0 %v196
    %1262 = vmatpush.msra.mxu0 %v192
    %1263 = vmatpush.msra.mxu0 %v188
    %1264 = vmatpush.msra.mxu0 %v184
    %1265 = vmatpush.msra.mxu0 %v180
    %1266 = vmatpush.msra.mxu0 %v176
    %1267 = vmatpush.msra.mxu0 %v172
    %1268 = vmatpush.msra.mxu0 %v168
    %1269 = vmatpush.msra.mxu0 %v164
    %1270 = vmatpush.msra.mxu0 %v160
    %1271 = vmatmul.f32.gmra.mxu0 %v1213
    %v1272 = vpop.f32.mrf.mxu0
    %v1273 = vadd.f32 0.0, %v1272
    %1274 = vdwg.mxu0
    %1275 = vmatpush.msra.mxu0 %v221
    %1276 = vmatpush.msra.mxu0 %v217
    %1277 = vmatpush.msra.mxu0 %v213
    %1278 = vmatpush.msra.mxu0 %v209
    %1279 = vmatpush.msra.mxu0 %v205
    %1280 = vmatpush.msra.mxu0 %v201
    %1281 = vmatpush.msra.mxu0 %v197
    %1282 = vmatpush.msra.mxu0 %v193
    %1283 = vmatpush.msra.mxu0 %v189
    %1284 = vmatpush.msra.mxu0 %v185
    %1285 = vmatpush.msra.mxu0 %v181
    %1286 = vmatpush.msra.mxu0 %v177
    %1287 = vmatpush.msra.mxu0 %v173
    %1288 = vmatpush.msra.mxu0 %v169
    %1289 = vmatpush.msra.mxu0 %v165
    %1290 = vmatpush.msra.mxu0 %v161
    %1291 = vmatmul.f32.gmra.mxu0 %v1213
    %v1292 = vpop.f32.mrf.mxu0
    %v1293 = vadd.f32 0.0, %v1292
    %1294 = vdwg.mxu0
    %v1299 = vrot.slane %v1233, 4
    %v1300 = vrot.slane %v1253, 4
    %v1301 = vrot.slane %v1273, 4
    %v1302 = vrot.slane %v1293, 4
    %v1307 = vadd.f32 %v1208, %v1299
    %v1308 = vadd.f32 %v1209, %v1300
    %v1309 = vadd.f32 %v1210, %v1301
    %v1310 = vadd.f32 %v1211, %v1302
    %v1311 = vxor.u32 %v1307, 2147483648
    %v1312 = vxor.u32 %v1308, 2147483648
    %v1313 = vxor.u32 %v1309, 2147483648
    %v1314 = vmul.f32 %v1311, 1.442695
    %v1315 = vpow.pop %v1314
    %v1316 = vmul.f32 %v1312, 1.442695
    %v1317 = vpow.pop %v1316
    %v1318 = vmul.f32 %v1313, 1.442695
    %v1319 = vpow.pop %v1318
    %v1320 = vadd.f32 %v1315, 1.0
    %v1321 = vadd.f32 %v1317, 1.0
    %v1322 = vadd.f32 %v1319, 1.0
    %v1323 = vrcp.pop %v1320
    %v1324 = vmul.f32 %v1320, %v1323
    %v1325 = vsub.f32 1.0, %v1324
    %v1326 = vmul.f32 %v1323, %v1325
    %v1327 = vadd.f32 %v1323, %v1326
    %vm1328 = vweird.f32 %v1320
    %vm1329 = vweird.f32 %v1323
    %vm1330 = vmor %vm1328, %vm1329
    %v1331 = vsel %vm1330, %v1323, %v1327
    %v1332 = vand.u32 2147483647, %v1320
    %vm1333 = vcmp.eq.f32.partialorder %v1332, 8.507059e+37
    %v1334 = vand.u32 %v1320, 2147483648
    %v1335 = vor.u32 1.1754944e-38, %v1334
    %v1336 = vsel %vm1333, %v1335, %v1331
    %v1337 = vmul.f32 1.0, %v1336
    %v1338 = vrcp.pop %v1321
    %v1339 = vmul.f32 %v1321, %v1338
    %v1340 = vsub.f32 1.0, %v1339
    %v1341 = vmul.f32 %v1338, %v1340
    %v1342 = vadd.f32 %v1338, %v1341
    %vm1343 = vweird.f32 %v1321
    %vm1344 = vweird.f32 %v1338
    %vm1345 = vmor %vm1343, %vm1344
    %v1346 = vsel %vm1345, %v1338, %v1342
    %v1347 = vand.u32 2147483647, %v1321
    %vm1348 = vcmp.eq.f32.partialorder %v1347, 8.507059e+37
    %v1349 = vand.u32 %v1321, 2147483648
    %v1350 = vor.u32 1.1754944e-38, %v1349
    %v1351 = vsel %vm1348, %v1350, %v1346
    %v1352 = vmul.f32 1.0, %v1351
    %v1353 = vrcp.pop %v1322
    %v1354 = vmul.f32 %v1322, %v1353
    %v1355 = vsub.f32 1.0, %v1354
    %v1356 = vmul.f32 %v1353, %v1355
    %v1357 = vadd.f32 %v1353, %v1356
    %vm1358 = vweird.f32 %v1322
    %vm1359 = vweird.f32 %v1353
    %vm1360 = vmor %vm1358, %vm1359
    %v1361 = vsel %vm1360, %v1353, %v1357
    %v1362 = vand.u32 2147483647, %v1322
    %vm1363 = vcmp.eq.f32.partialorder %v1362, 8.507059e+37
    %v1364 = vand.u32 %v1322, 2147483648
    %v1365 = vor.u32 1.1754944e-38, %v1364
    %v1366 = vsel %vm1363, %v1365, %v1361
    %v1367 = vmul.f32 1.0, %v1366
    %v1368 = vtanh.pop %v1310
    %v1370 = vrot.slane %v1204, 6
    %v1372 = vmul.f32 %v1352, %v1370
    %v1373 = vmul.f32 %v1337, %v1368
    %v1374 = vadd.f32 %v1372, %v1373
    %v1375 = vtanh.pop %v1374
    %v1376 = vmul.f32 %v1367, %v1375
    %1377 = vst [vmem:[#allocation5 + $0x8] sm:$0x30] %v1376
    %v1378 = vld [vmem:[#allocation2 + $0x20] sm:$0xc0]
    %v1379 = vld [vmem:[#allocation2 + $0x28] sm:$0xc0]
    %v1380 = vld [vmem:[#allocation2 + $0x30] sm:$0xc0]
    %v1381 = vld [vmem:[#allocation2 + $0x38] sm:$0xc0]
    %v1383 = vrot.slane %v1376, 4
    %1385 = vmatpush.msra.mxu0 %v218
    %1386 = vmatpush.msra.mxu0 %v214
    %1387 = vmatpush.msra.mxu0 %v210
    %1388 = vmatpush.msra.mxu0 %v206
    %1389 = vmatpush.msra.mxu0 %v202
    %1390 = vmatpush.msra.mxu0 %v198
    %1391 = vmatpush.msra.mxu0 %v194
    %1392 = vmatpush.msra.mxu0 %v190
    %1393 = vmatpush.msra.mxu0 %v186
    %1394 = vmatpush.msra.mxu0 %v182
    %1395 = vmatpush.msra.mxu0 %v178
    %1396 = vmatpush.msra.mxu0 %v174
    %1397 = vmatpush.msra.mxu0 %v170
    %1398 = vmatpush.msra.mxu0 %v166
    %1399 = vmatpush.msra.mxu0 %v162
    %1400 = vmatpush.msra.mxu0 %v158
    %1401 = vmatmul.f32.gmra.mxu0 %v1383
    %v1402 = vpop.f32.mrf.mxu0
    %v1403 = vadd.f32 0.0, %v1402
    %1404 = vdwg.mxu0
    %1405 = vmatpush.msra.mxu0 %v219
    %1406 = vmatpush.msra.mxu0 %v215
    %1407 = vmatpush.msra.mxu0 %v211
    %1408 = vmatpush.msra.mxu0 %v207
    %1409 = vmatpush.msra.mxu0 %v203
    %1410 = vmatpush.msra.mxu0 %v199
    %1411 = vmatpush.msra.mxu0 %v195
    %1412 = vmatpush.msra.mxu0 %v191
    %1413 = vmatpush.msra.mxu0 %v187
    %1414 = vmatpush.msra.mxu0 %v183
    %1415 = vmatpush.msra.mxu0 %v179
    %1416 = vmatpush.msra.mxu0 %v175
    %1417 = vmatpush.msra.mxu0 %v171
    %1418 = vmatpush.msra.mxu0 %v167
    %1419 = vmatpush.msra.mxu0 %v163
    %1420 = vmatpush.msra.mxu0 %v159
    %1421 = vmatmul.f32.gmra.mxu0 %v1383
    %v1422 = vpop.f32.mrf.mxu0
    %v1423 = vadd.f32 0.0, %v1422
    %1424 = vdwg.mxu0
    %1425 = vmatpush.msra.mxu0 %v220
    %1426 = vmatpush.msra.mxu0 %v216
    %1427 = vmatpush.msra.mxu0 %v212
    %1428 = vmatpush.msra.mxu0 %v208
    %1429 = vmatpush.msra.mxu0 %v204
    %1430 = vmatpush.msra.mxu0 %v200
    %1431 = vmatpush.msra.mxu0 %v196
    %1432 = vmatpush.msra.mxu0 %v192
    %1433 = vmatpush.msra.mxu0 %v188
    %1434 = vmatpush.msra.mxu0 %v184
    %1435 = vmatpush.msra.mxu0 %v180
    %1436 = vmatpush.msra.mxu0 %v176
    %1437 = vmatpush.msra.mxu0 %v172
    %1438 = vmatpush.msra.mxu0 %v168
    %1439 = vmatpush.msra.mxu0 %v164
    %1440 = vmatpush.msra.mxu0 %v160
    %1441 = vmatmul.f32.gmra.mxu0 %v1383
    %v1442 = vpop.f32.mrf.mxu0
    %v1443 = vadd.f32 0.0, %v1442
    %1444 = vdwg.mxu0
    %1445 = vmatpush.msra.mxu0 %v221
    %1446 = vmatpush.msra.mxu0 %v217
    %1447 = vmatpush.msra.mxu0 %v213
    %1448 = vmatpush.msra.mxu0 %v209
    %1449 = vmatpush.msra.mxu0 %v205
    %1450 = vmatpush.msra.mxu0 %v201
    %1451 = vmatpush.msra.mxu0 %v197
    %1452 = vmatpush.msra.mxu0 %v193
    %1453 = vmatpush.msra.mxu0 %v189
    %1454 = vmatpush.msra.mxu0 %v185
    %1455 = vmatpush.msra.mxu0 %v181
    %1456 = vmatpush.msra.mxu0 %v177
    %1457 = vmatpush.msra.mxu0 %v173
    %1458 = vmatpush.msra.mxu0 %v169
    %1459 = vmatpush.msra.mxu0 %v165
    %1460 = vmatpush.msra.mxu0 %v161
    %1461 = vmatmul.f32.gmra.mxu0 %v1383
    %v1462 = vpop.f32.mrf.mxu0
    %v1463 = vadd.f32 0.0, %v1462
    %1464 = vdwg.mxu0
    %v1469 = vrot.slane %v1403, 2
    %v1470 = vrot.slane %v1423, 2
    %v1471 = vrot.slane %v1443, 2
    %v1472 = vrot.slane %v1463, 2
    %v1477 = vadd.f32 %v1378, %v1469
    %v1478 = vadd.f32 %v1379, %v1470
    %v1479 = vadd.f32 %v1380, %v1471
    %v1480 = vadd.f32 %v1381, %v1472
    %v1481 = vxor.u32 %v1477, 2147483648
    %v1482 = vxor.u32 %v1478, 2147483648
    %v1483 = vxor.u32 %v1479, 2147483648
    %v1484 = vmul.f32 %v1481, 1.442695
    %v1485 = vpow.pop %v1484
    %v1486 = vmul.f32 %v1482, 1.442695
    %v1487 = vpow.pop %v1486
    %v1488 = vmul.f32 %v1483, 1.442695
    %v1489 = vpow.pop %v1488
    %v1490 = vadd.f32 %v1485, 1.0
    %v1491 = vadd.f32 %v1487, 1.0
    %v1492 = vadd.f32 %v1489, 1.0
    %v1493 = vrcp.pop %v1490
    %v1494 = vmul.f32 %v1490, %v1493
    %v1495 = vsub.f32 1.0, %v1494
    %v1496 = vmul.f32 %v1493, %v1495
    %v1497 = vadd.f32 %v1493, %v1496
    %vm1498 = vweird.f32 %v1490
    %vm1499 = vweird.f32 %v1493
    %vm1500 = vmor %vm1498, %vm1499
    %v1501 = vsel %vm1500, %v1493, %v1497
    %v1502 = vand.u32 2147483647, %v1490
    %vm1503 = vcmp.eq.f32.partialorder %v1502, 8.507059e+37
    %v1504 = vand.u32 %v1490, 2147483648
    %v1505 = vor.u32 1.1754944e-38, %v1504
    %v1506 = vsel %vm1503, %v1505, %v1501
    %v1507 = vmul.f32 1.0, %v1506
    %v1508 = vrcp.pop %v1491
    %v1509 = vmul.f32 %v1491, %v1508
    %v1510 = vsub.f32 1.0, %v1509
    %v1511 = vmul.f32 %v1508, %v1510
    %v1512 = vadd.f32 %v1508, %v1511
    %vm1513 = vweird.f32 %v1491
    %vm1514 = vweird.f32 %v1508
    %vm1515 = vmor %vm1513, %vm1514
    %v1516 = vsel %vm1515, %v1508, %v1512
    %v1517 = vand.u32 2147483647, %v1491
    %vm1518 = vcmp.eq.f32.partialorder %v1517, 8.507059e+37
    %v1519 = vand.u32 %v1491, 2147483648
    %v1520 = vor.u32 1.1754944e-38, %v1519
    %v1521 = vsel %vm1518, %v1520, %v1516
    %v1522 = vmul.f32 1.0, %v1521
    %v1523 = vrcp.pop %v1492
    %v1524 = vmul.f32 %v1492, %v1523
    %v1525 = vsub.f32 1.0, %v1524
    %v1526 = vmul.f32 %v1523, %v1525
    %v1527 = vadd.f32 %v1523, %v1526
    %vm1528 = vweird.f32 %v1492
    %vm1529 = vweird.f32 %v1523
    %vm1530 = vmor %vm1528, %vm1529
    %v1531 = vsel %vm1530, %v1523, %v1527
    %v1532 = vand.u32 2147483647, %v1492
    %vm1533 = vcmp.eq.f32.partialorder %v1532, 8.507059e+37
    %v1534 = vand.u32 %v1492, 2147483648
    %v1535 = vor.u32 1.1754944e-38, %v1534
    %v1536 = vsel %vm1533, %v1535, %v1531
    %v1537 = vmul.f32 1.0, %v1536
    %v1538 = vtanh.pop %v1480
    %v1540 = vrot.slane %v1374, 6
    %v1542 = vmul.f32 %v1522, %v1540
    %v1543 = vmul.f32 %v1507, %v1538
    %v1544 = vadd.f32 %v1542, %v1543
    %v1545 = vtanh.pop %v1544
    %v1546 = vmul.f32 %v1537, %v1545
    %1547 = vst [vmem:[#allocation5 + $0x8] sm:$0xc0] %v1546
    %1548 = vst [vmem:[#allocation3 - $0x6] sm:$0xc0] %v1546
    %1549 = vst [vmem:[#allocation4 - $0x6] sm:$0xc0] %v1544
    %1550 = vst [vmem:[%s7 - $0x6] sm:$0xc0] %v1546
    %1551 = vst [vmem:[%s8 - $0x6] sm:$0xc0] %v1544
    // Predicated region
    $region30: #{base_rnn_forward.1} parent=1 // pred_check
      _
    $region31: #{base_rnn_forward.1} parent=1 // pred_check_branch
      %1553 = sbr.rel (0) target = $region33
    $region32: #{base_rnn_forward.1} parent=1 // pred_region
      %1555 = vsyncadd [#allocation6], 0
      %s1556 = sshll.u32 [#allocation5], 4
      %s1557 = int_to_ptr.vmem [resolvable:$true] %s1556
      %s1558 = sshll.u32 %s6, 4
      %s1559 = int_to_ptr.hbm [resolvable:$true] %s1558
      %1564 = dma.vmem_to_hbm [thread:$0]  %s1557, 256, %s1559, [#allocation6], 128, 128, 8
    $region33: #{base_rnn_forward.1} parent=1 // pred_fallthru
      _
    // Predicated region
    $region34: #{base_rnn_forward.1} parent=1 // pred_check
      _
    $region35: #{base_rnn_forward.1} parent=1 // pred_check_branch
      %1566 = sbr.rel (0) target = $region37
    $region36: #{base_rnn_forward.1} parent=1 // pred_region
      _
    $region37: #{base_rnn_forward.1} parent=1 // pred_fallthru
      _
    // Predicated region
    $region38: #{base_rnn_forward.1} parent=1 // pred_check
      _
    $region39: #{base_rnn_forward.1} parent=1 // pred_check_branch
      %1568 = sbr.rel (0) target = $region41
    $region40: #{base_rnn_forward.1} parent=1 // pred_region
      _
    $region41: #{base_rnn_forward.1} parent=1 // pred_fallthru
      _
    // Predicated region
    $region42: #{base_rnn_forward.1} parent=1 // pred_check
      _
    $region43: #{base_rnn_forward.1} parent=1 // pred_check_branch
      %1570 = sbr.rel (0) target = $region45
    $region44: #{base_rnn_forward.1} parent=1 // pred_region
      %1572 = dma.done [#allocation6], 256
    $region45: #{base_rnn_forward.1} parent=1 // pred_fallthru
      _
    // Predicated region
    $region46: #{base_rnn_forward.1} parent=1 // pred_check
      _
    $region47: #{base_rnn_forward.1} parent=1 // pred_check_branch
      %1574 = sbr.rel (0) target = $region49
    $region48: #{base_rnn_forward.1} parent=1 // pred_region
      _
    $region49: #{base_rnn_forward.1} parent=1 // pred_fallthru
      _
    // Predicated region
    $region50: #{base_rnn_forward.1} parent=1 // pred_check
      _
    $region51: #{base_rnn_forward.1} parent=1 // pred_check_branch
      %1576 = sbr.rel (0) target = $region53
    $region52: #{base_rnn_forward.1} parent=1 // pred_region
      _
    $region53: #{base_rnn_forward.1} parent=1 // pred_fallthru
      _
    %1577 = vsyncpa [#allocation6], 1

</llo_original>
